<compile_context>
chip_gen: v7x
topology: tpu7x:2x2x1
jax: 0.10.0
libtpu: 0.0.40
codegen_flags: <defaults>
</compile_context>

<pallas_src>
import functools
import math

import jax
import jax.numpy as jnp
from jax.experimental import pallas as pl
from jax.experimental.pallas import tpu as pltpu

# ----------------------------- small ViT config -----------------------------
IMG = 16          # image spatial size (DeiT uses 224)
PATCH = 8         # patch size (DeiT uses 16)
IN_CH = 3
EMBED = 32        # embedding dim (DeiT base: 768)
DEPTH = 2         # transformer blocks (DeiT base: 12)
HEADS = 4         # attention heads (DeiT base: 12)
HD = EMBED // HEADS
MLP_HIDDEN = 4 * EMBED
CLASSES = 10      # (DeiT: 1000)
NPATCH = (IMG // PATCH) ** 2
SEQ = NPATCH + 2  # + cls token + distillation token
LN_EPS = 1e-6     # timm/DeiT LayerNorm eps
CPP = IN_CH * PATCH * PATCH


# ----------------------------- in-kernel helpers -----------------------------
def _ln(x, g, b, eps=LN_EPS):
    """LayerNorm over the last axis (f32)."""
    mu = jnp.mean(x, axis=-1, keepdims=True)
    var = jnp.mean(jnp.square(x - mu), axis=-1, keepdims=True)
    return (x - mu) * jax.lax.rsqrt(var + eps) * g + b


def _gelu(x):
    """Exact erf GELU (nn.GELU in timm's ViT MLP), f32."""
    return 0.5 * x * (1.0 + jax.lax.erf(x * (1.0 / math.sqrt(2.0))))


def _mm(a_bf16, w_bf16):
    """MXU matmul: bf16 inputs, f32 accumulation."""
    return jnp.dot(a_bf16, w_bf16, preferred_element_type=jnp.float32)


# ------------------------------ fused ViNT kernel ----------------------------
def _vint_kernel(xp_ref, pw_ref, pb_ref, cd_ref, pos_ref,
                 n1g_ref, n1b_ref, qkvw_ref, qkvb_ref, projw_ref, projb_ref,
                 n2g_ref, n2b_ref, fc1w_ref, fc1b_ref, fc2w_ref, fc2b_ref,
                 ng_ref, nb_ref, hw_ref, hb_ref, hdw_ref, hdb_ref,
                 out_ref, h_scr, attn_scr, *, bt):
    """grid = (G, DEPTH).  One step = one transformer block on a batch-half of bt
    images; the residual stream (bt*SEQ, EMBED) lives in VMEM across the depth axis.
    """
    d = pl.program_id(1)

    # -------- d == 0: patch embed + cls/dist tokens + positional embedding --------
    @pl.when(d == 0)
    def _init():
        xp = xp_ref[...].reshape(bt * NPATCH, CPP)
        tok = _mm(xp.astype(jnp.bfloat16), pw_ref[...]) + pb_ref[...]
        tok = tok.reshape(bt, NPATCH, EMBED)
        cd = cd_ref[...] + pos_ref[0:2, :]              # (2, EMBED): cls, dist
        ptok = pos_ref[2:, :]                           # (NPATCH, EMBED)
        for b in range(bt):                             # static, bt is tiny
            h_scr[b * SEQ:b * SEQ + 2, :] = cd
            h_scr[b * SEQ + 2:(b + 1) * SEQ, :] = tok[b] + ptok
        # (dropouts are identity: model is in eval mode)

    h = h_scr[...]                                      # (bt*SEQ, EMBED), f32

    # -------- MHSA: LN1 -> QKV -> softmax(QK^T)V -> proj -> +res --------
    y = _ln(h, n1g_ref[0], n1b_ref[0]).astype(jnp.bfloat16)
    qkv = _mm(y, qkvw_ref[0]) + qkvb_ref[0]             # (bt*SEQ, 3*EMBED), f32
    qkv = qkv.reshape(bt, SEQ, 3 * EMBED).astype(jnp.bfloat16)

    # TODO(synk): at DeiT-base head counts, switch to lax.fori_loop(unroll=...) to
    # bound vreg live ranges; 4 heads at toy dims are fine statically unrolled.
    for hh in range(HEADS):                             # static lane slices
        q_h = qkv[:, :, hh * HD:(hh + 1) * HD]
        k_h = qkv[:, :, EMBED + hh * HD:EMBED + (hh + 1) * HD]
        v_h = qkv[:, :, 2 * EMBED + hh * HD:2 * EMBED + (hh + 1) * HD]
        # scale already folded into the Q columns of qkv_w / qkv_b at pack time.
        s = jax.lax.dot_general(                        # (bt, SEQ, SEQ), f32
            q_h, k_h,
            dimension_numbers=(((2,), (2,)), ((0,), (0,))),
            preferred_element_type=jnp.float32)
        s = s - jnp.max(s, axis=-1, keepdims=True)
        p = jnp.exp(s)
        p = p * pl.reciprocal(jnp.sum(p, axis=-1, keepdims=True), approx=True)
        o_h = jax.lax.dot_general(                      # (bt, SEQ, HD), f32
            p.astype(jnp.bfloat16), v_h,
            dimension_numbers=(((2,), (1,)), ((0,), (0,))),
            preferred_element_type=jnp.float32)
        # stash head output at its lane offset -> one projection matmul later
        attn_scr[:, hh * HD:(hh + 1) * HD] = (
            o_h.reshape(bt * SEQ, HD).astype(attn_scr.dtype))

    attn = _mm(attn_scr[...], projw_ref[0]) + projb_ref[0]
    h = h + attn

    # -------- MLP: LN2 -> fc1 -> GELU -> fc2 -> +res --------
    y = _ln(h, n2g_ref[0], n2b_ref[0]).astype(jnp.bfloat16)
    z = _mm(y, fc1w_ref[0]) + fc1b_ref[0]
    z = _gelu(z).astype(jnp.bfloat16)
    z = _mm(z, fc2w_ref[0]) + fc2b_ref[0]
    h = h + z

    h_scr[...] = h

    # -------- d == DEPTH - 1: final LayerNorm + dual heads (eval: averaged) --------
    @pl.when(d == DEPTH - 1)
    def _final():
        hv = h.reshape(bt, SEQ, EMBED)
        cls_tok = hv[:, 0, :]                           # (bt, EMBED)
        dist_tok = hv[:, 1, :]
        c = _ln(cls_tok, ng_ref[...], nb_ref[...]).astype(jnp.bfloat16)
        t = _ln(dist_tok, ng_ref[...], nb_ref[...]).astype(jnp.bfloat16)
        yc = _mm(c, hw_ref[...]) + hb_ref[...]
        yd = _mm(t, hdw_ref[...]) + hdb_ref[...]
        out_ref[0] = (0.5 * (yc + yd)).astype(out_ref.dtype)


# --------------------------- parameter initialization ------------------------
def init_params(key):
    # TODO(synk): torch.hub pretrained DeiT checkpoint cannot be loaded here;
    # parameters are synthetic, deterministic (PRNGKey-based) with matching shapes.
    def nrm(k, shape, std=0.02):
        return (std * jax.random.normal(k, shape)).astype(jnp.float32)

    keys = iter(jax.random.split(key, 8 + 4 * DEPTH))
    params = {
        "patch_w": nrm(next(keys), (EMBED, IN_CH, PATCH, PATCH)),  # conv OIHW
        "patch_b": jnp.zeros((EMBED,), jnp.float32),
        "cls_token": nrm(next(keys), (1, 1, EMBED)),
        "dist_token": nrm(next(keys), (1, 1, EMBED)),
        "pos_embed": nrm(next(keys), (1, SEQ, EMBED)),
        "norm_g": jnp.ones((EMBED,), jnp.float32),
        "norm_b": jnp.zeros((EMBED,), jnp.float32),
        "head_w": nrm(next(keys), (EMBED, CLASSES)),
        "head_b": jnp.zeros((CLASSES,), jnp.float32),
        "head_dist_w": nrm(next(keys), (EMBED, CLASSES)),
        "head_dist_b": jnp.zeros((CLASSES,), jnp.float32),
        "blocks": [],
    }
    for _ in range(DEPTH):
        params["blocks"].append({
            "n1_g": jnp.ones((EMBED,), jnp.float32),
            "n1_b": jnp.zeros((EMBED,), jnp.float32),
            "qkv_w": nrm(next(keys), (EMBED, 3 * EMBED)),
            "qkv_b": jnp.zeros((3 * EMBED,), jnp.float32),
            "proj_w": nrm(next(keys), (EMBED, EMBED)),
            "proj_b": jnp.zeros((EMBED,), jnp.float32),
            "n2_g": jnp.ones((EMBED,), jnp.float32),
            "n2_b": jnp.zeros((EMBED,), jnp.float32),
            "fc1_w": nrm(next(keys), (EMBED, MLP_HIDDEN)),
            "fc1_b": jnp.zeros((MLP_HIDDEN,), jnp.float32),
            "fc2_w": nrm(next(keys), (MLP_HIDDEN, EMBED)),
            "fc2_b": jnp.zeros((EMBED,), jnp.float32),
        })
    return params


def pack_params(params):
    """One-time transform to kernel-ready layout: stack per-block weights on DEPTH,
    fold the 1/sqrt(HD) attention scale into the Q columns, cast matmul weights to
    bf16 (halves weight DMA; activations/accumulation stay f32)."""
    scale = HD ** -0.5
    qscale = jnp.concatenate([jnp.full((EMBED,), scale, jnp.float32),
                              jnp.ones((2 * EMBED,), jnp.float32)])

    blocks = params["blocks"]

    def stk(name, shape, dtype=jnp.float32, colscale=None):
        w = jnp.stack([blk[name] for blk in blocks]).reshape((DEPTH,) + shape)
        if colscale is not None:
            w = w * colscale
        return w.astype(dtype)

    return {
        "pw": params["patch_w"].reshape(EMBED, CPP).T.astype(jnp.bfloat16),
        "pb": params["patch_b"].reshape(1, EMBED),
        "cd": jnp.concatenate([params["cls_token"], params["dist_token"]],
                              axis=1).reshape(2, EMBED),
        "pos": params["pos_embed"].reshape(SEQ, EMBED),
        "blocks": [
            stk("n1_g", (1, EMBED)), stk("n1_b", (1, EMBED)),
            stk("qkv_w", (EMBED, 3 * EMBED), jnp.bfloat16, qscale),
            stk("qkv_b", (1, 3 * EMBED), jnp.float32, qscale),
            stk("proj_w", (EMBED, EMBED), jnp.bfloat16), stk("proj_b", (1, EMBED)),
            stk("n2_g", (1, EMBED)), stk("n2_b", (1, EMBED)),
            stk("fc1_w", (EMBED, MLP_HIDDEN), jnp.bfloat16),
            stk("fc1_b", (1, MLP_HIDDEN)),
            stk("fc2_w", (MLP_HIDDEN, EMBED), jnp.bfloat16), stk("fc2_b", (1, EMBED)),
        ],
        "head": [
            params["norm_g"].reshape(1, EMBED), params["norm_b"].reshape(1, EMBED),
            params["head_w"].astype(jnp.bfloat16),
            params["head_b"].reshape(1, CLASSES),
            params["head_dist_w"].astype(jnp.bfloat16),
            params["head_dist_b"].reshape(1, CLASSES),
        ],
    }


# --------------------------------- forward -----------------------------------
def vint_forward(x, packed):
    """x: (B, 3, IMG, IMG) NCHW float32 -> logits (B, CLASSES)."""
    B = x.shape[0]
    Hp = IMG // PATCH

    # two batch halves when possible -> "parallel" axis keeps both v7x TCs busy
    G = 2 if (B >= 2 and B % 2 == 0) else 1
    Bt = B // G

    # patch unfold (layout glue only; the patch matmul happens inside the kernel)
    xp = x.reshape(B, IN_CH, Hp, PATCH, Hp, PATCH)
    xp = xp.transpose(0, 2, 4, 1, 3, 5).reshape(B, NPATCH, CPP)

    def bmap3(b, d):   # per-batch-half data
        return (b, 0, 0)

    def wmap3(b, d):   # per-block stacked weights, selected by depth index
        return (d, 0, 0)

    def cmap2(b, d):   # constants (fetched once; block index never changes)
        return (0, 0)

    in_specs = [
        pl.BlockSpec((Bt, NPATCH, CPP), bmap3),          # xp (unfolded patches)
        pl.BlockSpec((CPP, EMBED), cmap2),               # patch weight (bf16)
        pl.BlockSpec((1, EMBED), cmap2),                 # patch bias
        pl.BlockSpec((2, EMBED), cmap2),                 # cls + dist tokens
        pl.BlockSpec((SEQ, EMBED), cmap2),               # pos embed
        # per-block weights, stacked on DEPTH
        pl.BlockSpec((1, 1, EMBED), wmap3),              # n1_g
        pl.BlockSpec((1, 1, EMBED), wmap3),              # n1_b
        pl.BlockSpec((1, EMBED, 3 * EMBED), wmap3),      # qkv_w (bf16, Q pre-scaled)
        pl.BlockSpec((1, 1, 3 * EMBED), wmap3),          # qkv_b (Q pre-scaled)
        pl.BlockSpec((1, EMBED, EMBED), wmap3),          # proj_w (bf16)
        pl.BlockSpec((1, 1, EMBED), wmap3),              # proj_b
        pl.BlockSpec((1, 1, EMBED), wmap3),              # n2_g
        pl.BlockSpec((1, 1, EMBED), wmap3),              # n2_b
        pl.BlockSpec((1, EMBED, MLP_HIDDEN), wmap3),     # fc1_w (bf16)
        pl.BlockSpec((1, 1, MLP_HIDDEN), wmap3),         # fc1_b
        pl.BlockSpec((1, MLP_HIDDEN, EMBED), wmap3),     # fc2_w (bf16)
        pl.BlockSpec((1, 1, EMBED), wmap3),              # fc2_b
        # final norm + classifier heads
        pl.BlockSpec((1, EMBED), cmap2),                 # norm_g
        pl.BlockSpec((1, EMBED), cmap2),                 # norm_b
        pl.BlockSpec((EMBED, CLASSES), cmap2),           # head_w (bf16)
        pl.BlockSpec((1, CLASSES), cmap2),               # head_b
        pl.BlockSpec((EMBED, CLASSES), cmap2),           # head_dist_w (bf16)
        pl.BlockSpec((1, CLASSES), cmap2),               # head_dist_b
    ]

    out = pl.pallas_call(
        functools.partial(_vint_kernel, bt=Bt),
        out_shape=jax.ShapeDtypeStruct((G, Bt, CLASSES), jnp.float32),
        grid=(G, DEPTH),
        in_specs=in_specs,
        out_specs=pl.BlockSpec((1, Bt, CLASSES), bmap3),
        scratch_shapes=[
            pltpu.VMEM((Bt * SEQ, EMBED), jnp.float32),      # residual stream
            pltpu.VMEM((Bt * SEQ, EMBED), jnp.bfloat16),     # per-head attn output
        ],
        compiler_params=pltpu.CompilerParams(
            dimension_semantics=("parallel", "arbitrary")),
        # TODO(synk): at DeiT-base dims set vmem_limit_bytes explicitly here
        # (v5e/v6e defaults 16/32 MiB; v7x physical VMEM is 64 MiB).
    )(xp,
      packed["pw"], packed["pb"], packed["cd"], packed["pos"],
      *packed["blocks"],
      *packed["head"])

    return out.reshape(B, CLASSES)


# ----------------------------------- main -------------------------------------
if __name__ == "__main__":
    key = jax.random.PRNGKey(0)
    k_param, k_data = jax.random.split(key)
    params = init_params(k_param)
    packed = pack_params(params)
    x = jax.random.normal(k_data, (2, IN_CH, IMG, IMG), dtype=jnp.float32)  # NCHW

    forward = jax.jit(vint_forward)
    logits = forward(x, packed)
    jax.block_until_ready(logits)
    assert logits.shape == (2, CLASSES)
    assert logits.dtype == jnp.float32
    assert bool(jnp.all(jnp.isfinite(logits)))
    print("KERNEL_OK")
</pallas_src>

<mosaic_0001>
module attributes {stable_mosaic.version = 11 : i64} {
  func.func @_vint_kernel(%arg0: i32, %arg1: i32, %arg2: memref<1x4x192xf32, #tpu.memory_space<vmem>>, %arg3: memref<192x32xbf16, #tpu.memory_space<vmem>>, %arg4: memref<1x32xf32, #tpu.memory_space<vmem>>, %arg5: memref<2x32xf32, #tpu.memory_space<vmem>>, %arg6: memref<6x32xf32, #tpu.memory_space<vmem>>, %arg7: memref<1x1x32xf32, #tpu.memory_space<vmem>>, %arg8: memref<1x1x32xf32, #tpu.memory_space<vmem>>, %arg9: memref<1x32x96xbf16, #tpu.memory_space<vmem>>, %arg10: memref<1x1x96xf32, #tpu.memory_space<vmem>>, %arg11: memref<1x32x32xbf16, #tpu.memory_space<vmem>>, %arg12: memref<1x1x32xf32, #tpu.memory_space<vmem>>, %arg13: memref<1x1x32xf32, #tpu.memory_space<vmem>>, %arg14: memref<1x1x32xf32, #tpu.memory_space<vmem>>, %arg15: memref<1x32x128xbf16, #tpu.memory_space<vmem>>, %arg16: memref<1x1x128xf32, #tpu.memory_space<vmem>>, %arg17: memref<1x128x32xbf16, #tpu.memory_space<vmem>>, %arg18: memref<1x1x32xf32, #tpu.memory_space<vmem>>, %arg19: memref<1x32xf32, #tpu.memory_space<vmem>>, %arg20: memref<1x32xf32, #tpu.memory_space<vmem>>, %arg21: memref<32x10xbf16, #tpu.memory_space<vmem>>, %arg22: memref<1x10xf32, #tpu.memory_space<vmem>>, %arg23: memref<32x10xbf16, #tpu.memory_space<vmem>>, %arg24: memref<1x10xf32, #tpu.memory_space<vmem>>, %arg25: memref<1x1x10xf32, #tpu.memory_space<vmem>>, %arg26: memref<6x32xf32, #tpu.memory_space<vmem>>, %arg27: memref<6x32xbf16, #tpu.memory_space<vmem>>) attributes {dimension_semantics = [#tpu.dimension_semantics<parallel>, #tpu.dimension_semantics<arbitrary>], iteration_bounds = array<i64: 2, 2>, scalar_prefetch = 0 : i64, scratch_operands = 2 : i64, tpu.core_type = #tpu.core_type<tc>, window_params = [{transform_indices = @transform_0, window_bounds = array<i64: 1, 4, 192>}, {pipeline_mode = #tpu.pipeline_mode<synchronous>, transform_indices = @transform_1, window_bounds = array<i64: 192, 32>}, {pipeline_mode = #tpu.pipeline_mode<synchronous>, transform_indices = @transform_2, window_bounds = array<i64: 1, 32>}, {pipeline_mode = #tpu.pipeline_mode<synchronous>, transform_indices = @transform_3, window_bounds = array<i64: 2, 32>}, {pipeline_mode = #tpu.pipeline_mode<synchronous>, transform_indices = @transform_4, window_bounds = array<i64: 6, 32>}, {transform_indices = @transform_5, window_bounds = array<i64: 1, 1, 32>}, {transform_indices = @transform_6, window_bounds = array<i64: 1, 1, 32>}, {transform_indices = @transform_7, window_bounds = array<i64: 1, 32, 96>}, {transform_indices = @transform_8, window_bounds = array<i64: 1, 1, 96>}, {transform_indices = @transform_9, window_bounds = array<i64: 1, 32, 32>}, {transform_indices = @transform_10, window_bounds = array<i64: 1, 1, 32>}, {transform_indices = @transform_11, window_bounds = array<i64: 1, 1, 32>}, {transform_indices = @transform_12, window_bounds = array<i64: 1, 1, 32>}, {transform_indices = @transform_13, window_bounds = array<i64: 1, 32, 128>}, {transform_indices = @transform_14, window_bounds = array<i64: 1, 1, 128>}, {transform_indices = @transform_15, window_bounds = array<i64: 1, 128, 32>}, {transform_indices = @transform_16, window_bounds = array<i64: 1, 1, 32>}, {pipeline_mode = #tpu.pipeline_mode<synchronous>, transform_indices = @transform_17, window_bounds = array<i64: 1, 32>}, {pipeline_mode = #tpu.pipeline_mode<synchronous>, transform_indices = @transform_18, window_bounds = array<i64: 1, 32>}, {pipeline_mode = #tpu.pipeline_mode<synchronous>, transform_indices = @transform_19, window_bounds = array<i64: 32, 10>}, {pipeline_mode = #tpu.pipeline_mode<synchronous>, transform_indices = @transform_20, window_bounds = array<i64: 1, 10>}, {pipeline_mode = #tpu.pipeline_mode<synchronous>, transform_indices = @transform_21, window_bounds = array<i64: 32, 10>}, {pipeline_mode = #tpu.pipeline_mode<synchronous>, transform_indices = @transform_22, window_bounds = array<i64: 1, 10>}, {transform_indices = @transform_23, window_bounds = array<i64: 1, 1, 10>}]} {
    %c0_i32 = arith.constant 0 : i32
    %0 = arith.cmpi eq, %arg1, %c0_i32 : i32
    %1 = arith.extui %0 : i1 to i32
    %c0_i32_0 = arith.constant 0 : i32
    %2 = arith.cmpi ne, %1, %c0_i32_0 : i32
    scf.if %2 {
      %c0_80 = arith.constant 0 : index
      %c0_81 = arith.constant 0 : index
      %c0_82 = arith.constant 0 : index
      %180 = vector.load %arg2[%c0_80, %c0_81, %c0_82] : memref<1x4x192xf32, #tpu.memory_space<vmem>>, vector<1x4x192xf32>
      %181 = vector.shape_cast %180 : vector<1x4x192xf32> to vector<4x192xf32>
      %182 = arith.truncf %181 : vector<4x192xf32> to vector<4x192xbf16>
      %c0_83 = arith.constant 0 : index
      %c0_84 = arith.constant 0 : index
      %183 = vector.load %arg3[%c0_83, %c0_84] : memref<192x32xbf16, #tpu.memory_space<vmem>>, vector<192x32xbf16>
      %cst_85 = arith.constant dense<0.000000e+00> : vector<4x32xf32>
      %184 = tpu.matmul %182, %183, %cst_85 {dimension_numbers = #tpu.dot_dimension_numbers<[1], [0], [0], [1], [0, 0, 1, 1], [], []>} : vector<4x192xbf16>, vector<192x32xbf16>, vector<4x32xf32> -> vector<4x32xf32>
      %c0_86 = arith.constant 0 : index
      %c0_87 = arith.constant 0 : index
      %185 = vector.load %arg4[%c0_86, %c0_87] : memref<1x32xf32, #tpu.memory_space<vmem>>, vector<1x32xf32>
      %186 = vector.broadcast %185 : vector<1x32xf32> to vector<4x32xf32>
      %187 = arith.addf %184, %186 : vector<4x32xf32>
      %188 = vector.shape_cast %187 : vector<4x32xf32> to vector<1x4x32xf32>
      %c0_88 = arith.constant 0 : index
      %c0_89 = arith.constant 0 : index
      %189 = vector.load %arg5[%c0_88, %c0_89] : memref<2x32xf32, #tpu.memory_space<vmem>>, vector<2x32xf32>
      %c0_90 = arith.constant 0 : index
      %c0_91 = arith.constant 0 : index
      %190 = vector.load %arg6[%c0_90, %c0_91] : memref<6x32xf32, #tpu.memory_space<vmem>>, vector<2x32xf32>
      %191 = arith.addf %189, %190 : vector<2x32xf32>
      %c2 = arith.constant 2 : index
      %c0_92 = arith.constant 0 : index
      %192 = vector.load %arg6[%c2, %c0_92] : memref<6x32xf32, #tpu.memory_space<vmem>>, vector<4x32xf32>
      %c0_93 = arith.constant 0 : index
      %c0_94 = arith.constant 0 : index
      %193 = vector.load %arg26[%c0_93, %c0_94] : memref<6x32xf32, #tpu.memory_space<vmem>>, vector<2x32xf32>
      tpu.vector_store %arg26[%c0_93, %c0_94], %191 {strides = array<i32>} : memref<6x32xf32, #tpu.memory_space<vmem>>, vector<2x32xf32>,
      %194 = vector.shape_cast %188 : vector<1x4x32xf32> to vector<4x32xf32>
      %195 = arith.addf %194, %192 : vector<4x32xf32>
      %c2_95 = arith.constant 2 : index
      %c0_96 = arith.constant 0 : index
      %196 = vector.load %arg26[%c2_95, %c0_96] : memref<6x32xf32, #tpu.memory_space<vmem>>, vector<4x32xf32>
      tpu.vector_store %arg26[%c2_95, %c0_96], %195 {strides = array<i32>} : memref<6x32xf32, #tpu.memory_space<vmem>>, vector<4x32xf32>,
    } else {
    }
    %c0 = arith.constant 0 : index
    %c0_1 = arith.constant 0 : index
    %3 = vector.load %arg26[%c0, %c0_1] : memref<6x32xf32, #tpu.memory_space<vmem>>, vector<6x32xf32>
    %c0_2 = arith.constant 0 : index
    %c0_3 = arith.constant 0 : index
    %c0_4 = arith.constant 0 : index
    %4 = vector.load %arg7[%c0_2, %c0_3, %c0_4] : memref<1x1x32xf32, #tpu.memory_space<vmem>>, vector<1x1x32xf32>
    %5 = vector.shape_cast %4 : vector<1x1x32xf32> to vector<1x32xf32>
    %c0_5 = arith.constant 0 : index
    %c0_6 = arith.constant 0 : index
    %c0_7 = arith.constant 0 : index
    %6 = vector.load %arg8[%c0_5, %c0_6, %c0_7] : memref<1x1x32xf32, #tpu.memory_space<vmem>>, vector<1x1x32xf32>
    %7 = vector.shape_cast %6 : vector<1x1x32xf32> to vector<1x32xf32>
    %cst = arith.constant dense<0.000000e+00> : vector<6xf32>
    %8 = vector.multi_reduction <add>, %3, %cst [1] : vector<6x32xf32> to vector<6xf32>
    %9 = vector.shape_cast %8 : vector<6xf32> to vector<6x1xf32>
    %cst_8 = arith.constant 3.200000e+01 : f32
    %10 = vector.broadcast %cst_8 : f32 to vector<6x1xf32>
    %11 = arith.divf %9, %10 : vector<6x1xf32>
    %12 = vector.broadcast %11 : vector<6x1xf32> to vector<6x32xf32>
    %13 = arith.subf %3, %12 : vector<6x32xf32>
    %14 = arith.mulf %13, %13 : vector<6x32xf32>
    %cst_9 = arith.constant dense<0.000000e+00> : vector<6xf32>
    %15 = vector.multi_reduction <add>, %14, %cst_9 [1] : vector<6x32xf32> to vector<6xf32>
    %16 = vector.shape_cast %15 : vector<6xf32> to vector<6x1xf32>
    %cst_10 = arith.constant 3.200000e+01 : f32
    %17 = vector.broadcast %cst_10 : f32 to vector<6x1xf32>
    %18 = arith.divf %16, %17 : vector<6x1xf32>
    %19 = vector.broadcast %11 : vector<6x1xf32> to vector<6x32xf32>
    %20 = arith.subf %3, %19 : vector<6x32xf32>
    %cst_11 = arith.constant 9.99999997E-7 : f32
    %21 = vector.broadcast %cst_11 : f32 to vector<6x1xf32>
    %22 = arith.addf %18, %21 : vector<6x1xf32>
    %23 = math.rsqrt %22 : vector<6x1xf32>
    %24 = vector.broadcast %23 : vector<6x1xf32> to vector<6x32xf32>
    %25 = arith.mulf %20, %24 : vector<6x32xf32>
    %26 = vector.broadcast %5 : vector<1x32xf32> to vector<6x32xf32>
    %27 = arith.mulf %25, %26 : vector<6x32xf32>
    %28 = vector.broadcast %7 : vector<1x32xf32> to vector<6x32xf32>
    %29 = arith.addf %27, %28 : vector<6x32xf32>
    %30 = arith.truncf %29 : vector<6x32xf32> to vector<6x32xbf16>
    %c0_12 = arith.constant 0 : index
    %c0_13 = arith.constant 0 : index
    %c0_14 = arith.constant 0 : index
    %31 = vector.load %arg9[%c0_12, %c0_13, %c0_14] : memref<1x32x96xbf16, #tpu.memory_space<vmem>>, vector<1x32x96xbf16>
    %32 = vector.shape_cast %31 : vector<1x32x96xbf16> to vector<32x96xbf16>
    %cst_15 = arith.constant dense<0.000000e+00> : vector<6x96xf32>
    %33 = tpu.matmul %30, %32, %cst_15 {dimension_numbers = #tpu.dot_dimension_numbers<[1], [0], [0], [1], [0, 0, 1, 1], [], []>} : vector<6x32xbf16>, vector<32x96xbf16>, vector<6x96xf32> -> vector<6x96xf32>
    %c0_16 = arith.constant 0 : index
    %c0_17 = arith.constant 0 : index
    %c0_18 = arith.constant 0 : index
    %34 = vector.load %arg10[%c0_16, %c0_17, %c0_18] : memref<1x1x96xf32, #tpu.memory_space<vmem>>, vector<1x1x96xf32>
    %35 = vector.shape_cast %34 : vector<1x1x96xf32> to vector<1x96xf32>
    %36 = vector.broadcast %35 : vector<1x96xf32> to vector<6x96xf32>
    %37 = arith.addf %33, %36 : vector<6x96xf32>
    %38 = vector.shape_cast %37 : vector<6x96xf32> to vector<1x6x96xf32>
    %39 = arith.truncf %38 : vector<1x6x96xf32> to vector<1x6x96xbf16>
    %40 = vector.extract_strided_slice %39 {offsets = [0, 0, 0], sizes = [1, 6, 8], strides = [1, 1, 1]} : vector<1x6x96xbf16> to vector<1x6x8xbf16>
    %41 = vector.extract_strided_slice %39 {offsets = [0, 0, 32], sizes = [1, 6, 8], strides = [1, 1, 1]} : vector<1x6x96xbf16> to vector<1x6x8xbf16>
    %42 = vector.extract_strided_slice %39 {offsets = [0, 0, 64], sizes = [1, 6, 8], strides = [1, 1, 1]} : vector<1x6x96xbf16> to vector<1x6x8xbf16>
    %cst_19 = arith.constant dense<0.000000e+00> : vector<1x6x6xf32>
    %43 = tpu.matmul %40, %41, %cst_19 {dimension_numbers = #tpu.dot_dimension_numbers<[2], [2], [1], [1], [0, 0, 0, 1, 1, 1], [0], [0]>} : vector<1x6x8xbf16>, vector<1x6x8xbf16>, vector<1x6x6xf32> -> vector<1x6x6xf32>
    %cst_20 = arith.constant dense<0xFF800000> : vector<1x6xf32>
    %44 = vector.multi_reduction <maximumf>, %43, %cst_20 [2] : vector<1x6x6xf32> to vector<1x6xf32>
    %45 = vector.shape_cast %44 : vector<1x6xf32> to vector<1x6x1xf32>
    %46 = vector.broadcast %45 : vector<1x6x1xf32> to vector<1x6x6xf32>
    %47 = arith.subf %43, %46 : vector<1x6x6xf32>
    %48 = math.exp %47 : vector<1x6x6xf32>
    %cst_21 = arith.constant dense<0.000000e+00> : vector<1x6xf32>
    %49 = vector.multi_reduction <add>, %48, %cst_21 [2] : vector<1x6x6xf32> to vector<1x6xf32>
    %50 = vector.shape_cast %49 : vector<1x6xf32> to vector<1x6x1xf32>
    %51 = tpu.reciprocal %50 {approx = true} : vector<1x6x1xf32> -> vector<1x6x1xf32>
    %52 = vector.broadcast %51 : vector<1x6x1xf32> to vector<1x6x6xf32>
    %53 = arith.mulf %48, %52 : vector<1x6x6xf32>
    %54 = arith.truncf %53 : vector<1x6x6xf32> to vector<1x6x6xbf16>
    %cst_22 = arith.constant dense<0.000000e+00> : vector<1x6x8xf32>
    %55 = tpu.matmul %54, %42, %cst_22 {dimension_numbers = #tpu.dot_dimension_numbers<[2], [1], [1], [2], [0, 0, 0, 1, 1, 2], [0], [0]>} : vector<1x6x6xbf16>, vector<1x6x8xbf16>, vector<1x6x8xf32> -> vector<1x6x8xf32>
    %56 = vector.shape_cast %55 : vector<1x6x8xf32> to vector<6x8xf32>
    %57 = arith.truncf %56 : vector<6x8xf32> to vector<6x8xbf16>
    %c0_23 = arith.constant 0 : index
    %c0_24 = arith.constant 0 : index
    %58 = vector.load %arg27[%c0_23, %c0_24] : memref<6x32xbf16, #tpu.memory_space<vmem>>, vector<6x8xbf16>
    tpu.vector_store %arg27[%c0_23, %c0_24], %57 {strides = array<i32>} : memref<6x32xbf16, #tpu.memory_space<vmem>>, vector<6x8xbf16>,
    %59 = vector.extract_strided_slice %39 {offsets = [0, 0, 8], sizes = [1, 6, 8], strides = [1, 1, 1]} : vector<1x6x96xbf16> to vector<1x6x8xbf16>
    %60 = vector.extract_strided_slice %39 {offsets = [0, 0, 40], sizes = [1, 6, 8], strides = [1, 1, 1]} : vector<1x6x96xbf16> to vector<1x6x8xbf16>
    %61 = vector.extract_strided_slice %39 {offsets = [0, 0, 72], sizes = [1, 6, 8], strides = [1, 1, 1]} : vector<1x6x96xbf16> to vector<1x6x8xbf16>
    %cst_25 = arith.constant dense<0.000000e+00> : vector<1x6x6xf32>
    %62 = tpu.matmul %59, %60, %cst_25 {dimension_numbers = #tpu.dot_dimension_numbers<[2], [2], [1], [1], [0, 0, 0, 1, 1, 1], [0], [0]>} : vector<1x6x8xbf16>, vector<1x6x8xbf16>, vector<1x6x6xf32> -> vector<1x6x6xf32>
    %cst_26 = arith.constant dense<0xFF800000> : vector<1x6xf32>
    %63 = vector.multi_reduction <maximumf>, %62, %cst_26 [2] : vector<1x6x6xf32> to vector<1x6xf32>
    %64 = vector.shape_cast %63 : vector<1x6xf32> to vector<1x6x1xf32>
    %65 = vector.broadcast %64 : vector<1x6x1xf32> to vector<1x6x6xf32>
    %66 = arith.subf %62, %65 : vector<1x6x6xf32>
    %67 = math.exp %66 : vector<1x6x6xf32>
    %cst_27 = arith.constant dense<0.000000e+00> : vector<1x6xf32>
    %68 = vector.multi_reduction <add>, %67, %cst_27 [2] : vector<1x6x6xf32> to vector<1x6xf32>
    %69 = vector.shape_cast %68 : vector<1x6xf32> to vector<1x6x1xf32>
    %70 = tpu.reciprocal %69 {approx = true} : vector<1x6x1xf32> -> vector<1x6x1xf32>
    %71 = vector.broadcast %70 : vector<1x6x1xf32> to vector<1x6x6xf32>
    %72 = arith.mulf %67, %71 : vector<1x6x6xf32>
    %73 = arith.truncf %72 : vector<1x6x6xf32> to vector<1x6x6xbf16>
    %cst_28 = arith.constant dense<0.000000e+00> : vector<1x6x8xf32>
    %74 = tpu.matmul %73, %61, %cst_28 {dimension_numbers = #tpu.dot_dimension_numbers<[2], [1], [1], [2], [0, 0, 0, 1, 1, 2], [0], [0]>} : vector<1x6x6xbf16>, vector<1x6x8xbf16>, vector<1x6x8xf32> -> vector<1x6x8xf32>
    %75 = vector.shape_cast %74 : vector<1x6x8xf32> to vector<6x8xf32>
    %76 = arith.truncf %75 : vector<6x8xf32> to vector<6x8xbf16>
    %c0_29 = arith.constant 0 : index
    %c8 = arith.constant 8 : index
    %77 = vector.load %arg27[%c0_29, %c8] : memref<6x32xbf16, #tpu.memory_space<vmem>>, vector<6x8xbf16>
    tpu.vector_store %arg27[%c0_29, %c8], %76 {strides = array<i32>} : memref<6x32xbf16, #tpu.memory_space<vmem>>, vector<6x8xbf16>,
    %78 = vector.extract_strided_slice %39 {offsets = [0, 0, 16], sizes = [1, 6, 8], strides = [1, 1, 1]} : vector<1x6x96xbf16> to vector<1x6x8xbf16>
    %79 = vector.extract_strided_slice %39 {offsets = [0, 0, 48], sizes = [1, 6, 8], strides = [1, 1, 1]} : vector<1x6x96xbf16> to vector<1x6x8xbf16>
    %80 = vector.extract_strided_slice %39 {offsets = [0, 0, 80], sizes = [1, 6, 8], strides = [1, 1, 1]} : vector<1x6x96xbf16> to vector<1x6x8xbf16>
    %cst_30 = arith.constant dense<0.000000e+00> : vector<1x6x6xf32>
    %81 = tpu.matmul %78, %79, %cst_30 {dimension_numbers = #tpu.dot_dimension_numbers<[2], [2], [1], [1], [0, 0, 0, 1, 1, 1], [0], [0]>} : vector<1x6x8xbf16>, vector<1x6x8xbf16>, vector<1x6x6xf32> -> vector<1x6x6xf32>
    %cst_31 = arith.constant dense<0xFF800000> : vector<1x6xf32>
    %82 = vector.multi_reduction <maximumf>, %81, %cst_31 [2] : vector<1x6x6xf32> to vector<1x6xf32>
    %83 = vector.shape_cast %82 : vector<1x6xf32> to vector<1x6x1xf32>
    %84 = vector.broadcast %83 : vector<1x6x1xf32> to vector<1x6x6xf32>
    %85 = arith.subf %81, %84 : vector<1x6x6xf32>
    %86 = math.exp %85 : vector<1x6x6xf32>
    %cst_32 = arith.constant dense<0.000000e+00> : vector<1x6xf32>
    %87 = vector.multi_reduction <add>, %86, %cst_32 [2] : vector<1x6x6xf32> to vector<1x6xf32>
    %88 = vector.shape_cast %87 : vector<1x6xf32> to vector<1x6x1xf32>
    %89 = tpu.reciprocal %88 {approx = true} : vector<1x6x1xf32> -> vector<1x6x1xf32>
    %90 = vector.broadcast %89 : vector<1x6x1xf32> to vector<1x6x6xf32>
    %91 = arith.mulf %86, %90 : vector<1x6x6xf32>
    %92 = arith.truncf %91 : vector<1x6x6xf32> to vector<1x6x6xbf16>
    %cst_33 = arith.constant dense<0.000000e+00> : vector<1x6x8xf32>
    %93 = tpu.matmul %92, %80, %cst_33 {dimension_numbers = #tpu.dot_dimension_numbers<[2], [1], [1], [2], [0, 0, 0, 1, 1, 2], [0], [0]>} : vector<1x6x6xbf16>, vector<1x6x8xbf16>, vector<1x6x8xf32> -> vector<1x6x8xf32>
    %94 = vector.shape_cast %93 : vector<1x6x8xf32> to vector<6x8xf32>
    %95 = arith.truncf %94 : vector<6x8xf32> to vector<6x8xbf16>
    %c0_34 = arith.constant 0 : index
    %c16 = arith.constant 16 : index
    %96 = vector.load %arg27[%c0_34, %c16] : memref<6x32xbf16, #tpu.memory_space<vmem>>, vector<6x8xbf16>
    tpu.vector_store %arg27[%c0_34, %c16], %95 {strides = array<i32>} : memref<6x32xbf16, #tpu.memory_space<vmem>>, vector<6x8xbf16>,
    %97 = vector.extract_strided_slice %39 {offsets = [0, 0, 24], sizes = [1, 6, 8], strides = [1, 1, 1]} : vector<1x6x96xbf16> to vector<1x6x8xbf16>
    %98 = vector.extract_strided_slice %39 {offsets = [0, 0, 56], sizes = [1, 6, 8], strides = [1, 1, 1]} : vector<1x6x96xbf16> to vector<1x6x8xbf16>
    %99 = vector.extract_strided_slice %39 {offsets = [0, 0, 88], sizes = [1, 6, 8], strides = [1, 1, 1]} : vector<1x6x96xbf16> to vector<1x6x8xbf16>
    %cst_35 = arith.constant dense<0.000000e+00> : vector<1x6x6xf32>
    %100 = tpu.matmul %97, %98, %cst_35 {dimension_numbers = #tpu.dot_dimension_numbers<[2], [2], [1], [1], [0, 0, 0, 1, 1, 1], [0], [0]>} : vector<1x6x8xbf16>, vector<1x6x8xbf16>, vector<1x6x6xf32> -> vector<1x6x6xf32>
    %cst_36 = arith.constant dense<0xFF800000> : vector<1x6xf32>
    %101 = vector.multi_reduction <maximumf>, %100, %cst_36 [2] : vector<1x6x6xf32> to vector<1x6xf32>
    %102 = vector.shape_cast %101 : vector<1x6xf32> to vector<1x6x1xf32>
    %103 = vector.broadcast %102 : vector<1x6x1xf32> to vector<1x6x6xf32>
    %104 = arith.subf %100, %103 : vector<1x6x6xf32>
    %105 = math.exp %104 : vector<1x6x6xf32>
    %cst_37 = arith.constant dense<0.000000e+00> : vector<1x6xf32>
    %106 = vector.multi_reduction <add>, %105, %cst_37 [2] : vector<1x6x6xf32> to vector<1x6xf32>
    %107 = vector.shape_cast %106 : vector<1x6xf32> to vector<1x6x1xf32>
    %108 = tpu.reciprocal %107 {approx = true} : vector<1x6x1xf32> -> vector<1x6x1xf32>
    %109 = vector.broadcast %108 : vector<1x6x1xf32> to vector<1x6x6xf32>
    %110 = arith.mulf %105, %109 : vector<1x6x6xf32>
    %111 = arith.truncf %110 : vector<1x6x6xf32> to vector<1x6x6xbf16>
    %cst_38 = arith.constant dense<0.000000e+00> : vector<1x6x8xf32>
    %112 = tpu.matmul %111, %99, %cst_38 {dimension_numbers = #tpu.dot_dimension_numbers<[2], [1], [1], [2], [0, 0, 0, 1, 1, 2], [0], [0]>} : vector<1x6x6xbf16>, vector<1x6x8xbf16>, vector<1x6x8xf32> -> vector<1x6x8xf32>
    %113 = vector.shape_cast %112 : vector<1x6x8xf32> to vector<6x8xf32>
    %114 = arith.truncf %113 : vector<6x8xf32> to vector<6x8xbf16>
    %c0_39 = arith.constant 0 : index
    %c24 = arith.constant 24 : index
    %115 = vector.load %arg27[%c0_39, %c24] : memref<6x32xbf16, #tpu.memory_space<vmem>>, vector<6x8xbf16>
    tpu.vector_store %arg27[%c0_39, %c24], %114 {strides = array<i32>} : memref<6x32xbf16, #tpu.memory_space<vmem>>, vector<6x8xbf16>,
    %c0_40 = arith.constant 0 : index
    %c0_41 = arith.constant 0 : index
    %116 = vector.load %arg27[%c0_40, %c0_41] : memref<6x32xbf16, #tpu.memory_space<vmem>>, vector<6x32xbf16>
    %c0_42 = arith.constant 0 : index
    %c0_43 = arith.constant 0 : index
    %c0_44 = arith.constant 0 : index
    %117 = vector.load %arg11[%c0_42, %c0_43, %c0_44] : memref<1x32x32xbf16, #tpu.memory_space<vmem>>, vector<1x32x32xbf16>
    %118 = vector.shape_cast %117 : vector<1x32x32xbf16> to vector<32x32xbf16>
    %cst_45 = arith.constant dense<0.000000e+00> : vector<6x32xf32>
    %119 = tpu.matmul %116, %118, %cst_45 {dimension_numbers = #tpu.dot_dimension_numbers<[1], [0], [0], [1], [0, 0, 1, 1], [], []>} : vector<6x32xbf16>, vector<32x32xbf16>, vector<6x32xf32> -> vector<6x32xf32>
    %c0_46 = arith.constant 0 : index
    %c0_47 = arith.constant 0 : index
    %c0_48 = arith.constant 0 : index
    %120 = vector.load %arg12[%c0_46, %c0_47, %c0_48] : memref<1x1x32xf32, #tpu.memory_space<vmem>>, vector<1x1x32xf32>
    %121 = vector.shape_cast %120 : vector<1x1x32xf32> to vector<1x32xf32>
    %122 = vector.broadcast %121 : vector<1x32xf32> to vector<6x32xf32>
    %123 = arith.addf %119, %122 : vector<6x32xf32>
    %124 = arith.addf %3, %123 : vector<6x32xf32>
    %c0_49 = arith.constant 0 : index
    %c0_50 = arith.constant 0 : index
    %c0_51 = arith.constant 0 : index
    %125 = vector.load %arg13[%c0_49, %c0_50, %c0_51] : memref<1x1x32xf32, #tpu.memory_space<vmem>>, vector<1x1x32xf32>
    %126 = vector.shape_cast %125 : vector<1x1x32xf32> to vector<1x32xf32>
    %c0_52 = arith.constant 0 : index
    %c0_53 = arith.constant 0 : index
    %c0_54 = arith.constant 0 : index
    %127 = vector.load %arg14[%c0_52, %c0_53, %c0_54] : memref<1x1x32xf32, #tpu.memory_space<vmem>>, vector<1x1x32xf32>
    %128 = vector.shape_cast %127 : vector<1x1x32xf32> to vector<1x32xf32>
    %cst_55 = arith.constant dense<0.000000e+00> : vector<6xf32>
    %129 = vector.multi_reduction <add>, %124, %cst_55 [1] : vector<6x32xf32> to vector<6xf32>
    %130 = vector.shape_cast %129 : vector<6xf32> to vector<6x1xf32>
    %cst_56 = arith.constant 3.200000e+01 : f32
    %131 = vector.broadcast %cst_56 : f32 to vector<6x1xf32>
    %132 = arith.divf %130, %131 : vector<6x1xf32>
    %133 = vector.broadcast %132 : vector<6x1xf32> to vector<6x32xf32>
    %134 = arith.subf %124, %133 : vector<6x32xf32>
    %135 = arith.mulf %134, %134 : vector<6x32xf32>
    %cst_57 = arith.constant dense<0.000000e+00> : vector<6xf32>
    %136 = vector.multi_reduction <add>, %135, %cst_57 [1] : vector<6x32xf32> to vector<6xf32>
    %137 = vector.shape_cast %136 : vector<6xf32> to vector<6x1xf32>
    %cst_58 = arith.constant 3.200000e+01 : f32
    %138 = vector.broadcast %cst_58 : f32 to vector<6x1xf32>
    %139 = arith.divf %137, %138 : vector<6x1xf32>
    %140 = vector.broadcast %132 : vector<6x1xf32> to vector<6x32xf32>
    %141 = arith.subf %124, %140 : vector<6x32xf32>
    %cst_59 = arith.constant 9.99999997E-7 : f32
    %142 = vector.broadcast %cst_59 : f32 to vector<6x1xf32>
    %143 = arith.addf %139, %142 : vector<6x1xf32>
    %144 = math.rsqrt %143 : vector<6x1xf32>
    %145 = vector.broadcast %144 : vector<6x1xf32> to vector<6x32xf32>
    %146 = arith.mulf %141, %145 : vector<6x32xf32>
    %147 = vector.broadcast %126 : vector<1x32xf32> to vector<6x32xf32>
    %148 = arith.mulf %146, %147 : vector<6x32xf32>
    %149 = vector.broadcast %128 : vector<1x32xf32> to vector<6x32xf32>
    %150 = arith.addf %148, %149 : vector<6x32xf32>
    %151 = arith.truncf %150 : vector<6x32xf32> to vector<6x32xbf16>
    %c0_60 = arith.constant 0 : index
    %c0_61 = arith.constant 0 : index
    %c0_62 = arith.constant 0 : index
    %152 = vector.load %arg15[%c0_60, %c0_61, %c0_62] : memref<1x32x128xbf16, #tpu.memory_space<vmem>>, vector<1x32x128xbf16>
    %153 = vector.shape_cast %152 : vector<1x32x128xbf16> to vector<32x128xbf16>
    %cst_63 = arith.constant dense<0.000000e+00> : vector<6x128xf32>
    %154 = tpu.matmul %151, %153, %cst_63 {dimension_numbers = #tpu.dot_dimension_numbers<[1], [0], [0], [1], [0, 0, 1, 1], [], []>} : vector<6x32xbf16>, vector<32x128xbf16>, vector<6x128xf32> -> vector<6x128xf32>
    %c0_64 = arith.constant 0 : index
    %c0_65 = arith.constant 0 : index
    %c0_66 = arith.constant 0 : index
    %155 = vector.load %arg16[%c0_64, %c0_65, %c0_66] : memref<1x1x128xf32, #tpu.memory_space<vmem>>, vector<1x1x128xf32>
    %156 = vector.shape_cast %155 : vector<1x1x128xf32> to vector<1x128xf32>
    %157 = vector.broadcast %156 : vector<1x128xf32> to vector<6x128xf32>
    %158 = arith.addf %154, %157 : vector<6x128xf32>
    %cst_67 = arith.constant 5.000000e-01 : f32
    %159 = vector.broadcast %cst_67 : f32 to vector<6x128xf32>
    %160 = arith.mulf %159, %158 : vector<6x128xf32>
    %cst_68 = arith.constant 0.707106769 : f32
    %161 = vector.broadcast %cst_68 : f32 to vector<6x128xf32>
    %162 = arith.mulf %158, %161 : vector<6x128xf32>
    %163 = math.erf %162 : vector<6x128xf32>
    %cst_69 = arith.constant 1.000000e+00 : f32
    %164 = vector.broadcast %cst_69 : f32 to vector<6x128xf32>
    %165 = arith.addf %164, %163 : vector<6x128xf32>
    %166 = arith.mulf %160, %165 : vector<6x128xf32>
    %167 = arith.truncf %166 : vector<6x128xf32> to vector<6x128xbf16>
    %c0_70 = arith.constant 0 : index
    %c0_71 = arith.constant 0 : index
    %c0_72 = arith.constant 0 : index
    %168 = vector.load %arg17[%c0_70, %c0_71, %c0_72] : memref<1x128x32xbf16, #tpu.memory_space<vmem>>, vector<1x128x32xbf16>
    %169 = vector.shape_cast %168 : vector<1x128x32xbf16> to vector<128x32xbf16>
    %cst_73 = arith.constant dense<0.000000e+00> : vector<6x32xf32>
    %170 = tpu.matmul %167, %169, %cst_73 {dimension_numbers = #tpu.dot_dimension_numbers<[1], [0], [0], [1], [0, 0, 1, 1], [], []>} : vector<6x128xbf16>, vector<128x32xbf16>, vector<6x32xf32> -> vector<6x32xf32>
    %c0_74 = arith.constant 0 : index
    %c0_75 = arith.constant 0 : index
    %c0_76 = arith.constant 0 : index
    %171 = vector.load %arg18[%c0_74, %c0_75, %c0_76] : memref<1x1x32xf32, #tpu.memory_space<vmem>>, vector<1x1x32xf32>
    %172 = vector.shape_cast %171 : vector<1x1x32xf32> to vector<1x32xf32>
    %173 = vector.broadcast %172 : vector<1x32xf32> to vector<6x32xf32>
    %174 = arith.addf %170, %173 : vector<6x32xf32>
    %175 = arith.addf %124, %174 : vector<6x32xf32>
    %c0_77 = arith.constant 0 : index
    %c0_78 = arith.constant 0 : index
    %176 = vector.load %arg26[%c0_77, %c0_78] : memref<6x32xf32, #tpu.memory_space<vmem>>, vector<6x32xf32>
    tpu.vector_store %arg26[%c0_77, %c0_78], %175 {strides = array<i32>} : memref<6x32xf32, #tpu.memory_space<vmem>>, vector<6x32xf32>,
    %c1_i32 = arith.constant 1 : i32
    %177 = arith.cmpi eq, %arg1, %c1_i32 : i32
    %178 = arith.extui %177 : i1 to i32
    %c0_i32_79 = arith.constant 0 : i32
    %179 = arith.cmpi ne, %178, %c0_i32_79 : i32
    scf.if %179 {
      %180 = vector.shape_cast %175 : vector<6x32xf32> to vector<1x6x32xf32>
      %181 = vector.extract_strided_slice %180 {offsets = [0, 0, 0], sizes = [1, 1, 32], strides = [1, 1, 1]} : vector<1x6x32xf32> to vector<1x1x32xf32>
      %182 = vector.shape_cast %181 : vector<1x1x32xf32> to vector<1x32xf32>
      %183 = vector.extract_strided_slice %180 {offsets = [0, 1, 0], sizes = [1, 1, 32], strides = [1, 1, 1]} : vector<1x6x32xf32> to vector<1x1x32xf32>
      %184 = vector.shape_cast %183 : vector<1x1x32xf32> to vector<1x32xf32>
      %c0_80 = arith.constant 0 : index
      %c0_81 = arith.constant 0 : index
      %185 = vector.load %arg19[%c0_80, %c0_81] : memref<1x32xf32, #tpu.memory_space<vmem>>, vector<1x32xf32>
      %c0_82 = arith.constant 0 : index
      %c0_83 = arith.constant 0 : index
      %186 = vector.load %arg20[%c0_82, %c0_83] : memref<1x32xf32, #tpu.memory_space<vmem>>, vector<1x32xf32>
      %cst_84 = arith.constant dense<0.000000e+00> : vector<1xf32>
      %187 = vector.multi_reduction <add>, %182, %cst_84 [1] : vector<1x32xf32> to vector<1xf32>
      %188 = vector.shape_cast %187 : vector<1xf32> to vector<1x1xf32>
      %cst_85 = arith.constant 3.200000e+01 : f32
      %189 = vector.broadcast %cst_85 : f32 to vector<1x1xf32>
      %190 = arith.divf %188, %189 : vector<1x1xf32>
      %191 = vector.broadcast %190 : vector<1x1xf32> to vector<1x32xf32>
      %192 = arith.subf %182, %191 : vector<1x32xf32>
      %193 = arith.mulf %192, %192 : vector<1x32xf32>
      %cst_86 = arith.constant dense<0.000000e+00> : vector<1xf32>
      %194 = vector.multi_reduction <add>, %193, %cst_86 [1] : vector<1x32xf32> to vector<1xf32>
      %195 = vector.shape_cast %194 : vector<1xf32> to vector<1x1xf32>
      %cst_87 = arith.constant 3.200000e+01 : f32
      %196 = vector.broadcast %cst_87 : f32 to vector<1x1xf32>
      %197 = arith.divf %195, %196 : vector<1x1xf32>
      %198 = vector.broadcast %190 : vector<1x1xf32> to vector<1x32xf32>
      %199 = arith.subf %182, %198 : vector<1x32xf32>
      %cst_88 = arith.constant 9.99999997E-7 : f32
      %200 = vector.broadcast %cst_88 : f32 to vector<1x1xf32>
      %201 = arith.addf %197, %200 : vector<1x1xf32>
      %202 = math.rsqrt %201 : vector<1x1xf32>
      %203 = vector.broadcast %202 : vector<1x1xf32> to vector<1x32xf32>
      %204 = arith.mulf %199, %203 : vector<1x32xf32>
      %205 = arith.mulf %204, %185 : vector<1x32xf32>
      %206 = arith.addf %205, %186 : vector<1x32xf32>
      %207 = arith.truncf %206 : vector<1x32xf32> to vector<1x32xbf16>
      %c0_89 = arith.constant 0 : index
      %c0_90 = arith.constant 0 : index
      %208 = vector.load %arg19[%c0_89, %c0_90] : memref<1x32xf32, #tpu.memory_space<vmem>>, vector<1x32xf32>
      %c0_91 = arith.constant 0 : index
      %c0_92 = arith.constant 0 : index
      %209 = vector.load %arg20[%c0_91, %c0_92] : memref<1x32xf32, #tpu.memory_space<vmem>>, vector<1x32xf32>
      %cst_93 = arith.constant dense<0.000000e+00> : vector<1xf32>
      %210 = vector.multi_reduction <add>, %184, %cst_93 [1] : vector<1x32xf32> to vector<1xf32>
      %211 = vector.shape_cast %210 : vector<1xf32> to vector<1x1xf32>
      %cst_94 = arith.constant 3.200000e+01 : f32
      %212 = vector.broadcast %cst_94 : f32 to vector<1x1xf32>
      %213 = arith.divf %211, %212 : vector<1x1xf32>
      %214 = vector.broadcast %213 : vector<1x1xf32> to vector<1x32xf32>
      %215 = arith.subf %184, %214 : vector<1x32xf32>
      %216 = arith.mulf %215, %215 : vector<1x32xf32>
      %cst_95 = arith.constant dense<0.000000e+00> : vector<1xf32>
      %217 = vector.multi_reduction <add>, %216, %cst_95 [1] : vector<1x32xf32> to vector<1xf32>
      %218 = vector.shape_cast %217 : vector<1xf32> to vector<1x1xf32>
      %cst_96 = arith.constant 3.200000e+01 : f32
      %219 = vector.broadcast %cst_96 : f32 to vector<1x1xf32>
      %220 = arith.divf %218, %219 : vector<1x1xf32>
      %221 = vector.broadcast %213 : vector<1x1xf32> to vector<1x32xf32>
      %222 = arith.subf %184, %221 : vector<1x32xf32>
      %cst_97 = arith.constant 9.99999997E-7 : f32
      %223 = vector.broadcast %cst_97 : f32 to vector<1x1xf32>
      %224 = arith.addf %220, %223 : vector<1x1xf32>
      %225 = math.rsqrt %224 : vector<1x1xf32>
      %226 = vector.broadcast %225 : vector<1x1xf32> to vector<1x32xf32>
      %227 = arith.mulf %222, %226 : vector<1x32xf32>
      %228 = arith.mulf %227, %208 : vector<1x32xf32>
      %229 = arith.addf %228, %209 : vector<1x32xf32>
      %230 = arith.truncf %229 : vector<1x32xf32> to vector<1x32xbf16>
      %c0_98 = arith.constant 0 : index
      %c0_99 = arith.constant 0 : index
      %231 = vector.load %arg21[%c0_98, %c0_99] : memref<32x10xbf16, #tpu.memory_space<vmem>>, vector<32x10xbf16>
      %cst_100 = arith.constant dense<0.000000e+00> : vector<1x10xf32>
      %232 = tpu.matmul %207, %231, %cst_100 {dimension_numbers = #tpu.dot_dimension_numbers<[1], [0], [0], [1], [0, 0, 1, 1], [], []>} : vector<1x32xbf16>, vector<32x10xbf16>, vector<1x10xf32> -> vector<1x10xf32>
      %c0_101 = arith.constant 0 : index
      %c0_102 = arith.constant 0 : index
      %233 = vector.load %arg22[%c0_101, %c0_102] : memref<1x10xf32, #tpu.memory_space<vmem>>, vector<1x10xf32>
      %234 = arith.addf %232, %233 : vector<1x10xf32>
      %c0_103 = arith.constant 0 : index
      %c0_104 = arith.constant 0 : index
      %235 = vector.load %arg23[%c0_103, %c0_104] : memref<32x10xbf16, #tpu.memory_space<vmem>>, vector<32x10xbf16>
      %cst_105 = arith.constant dense<0.000000e+00> : vector<1x10xf32>
      %236 = tpu.matmul %230, %235, %cst_105 {dimension_numbers = #tpu.dot_dimension_numbers<[1], [0], [0], [1], [0, 0, 1, 1], [], []>} : vector<1x32xbf16>, vector<32x10xbf16>, vector<1x10xf32> -> vector<1x10xf32>
      %c0_106 = arith.constant 0 : index
      %c0_107 = arith.constant 0 : index
      %237 = vector.load %arg24[%c0_106, %c0_107] : memref<1x10xf32, #tpu.memory_space<vmem>>, vector<1x10xf32>
      %238 = arith.addf %236, %237 : vector<1x10xf32>
      %239 = arith.addf %234, %238 : vector<1x10xf32>
      %cst_108 = arith.constant 5.000000e-01 : f32
      %240 = vector.broadcast %cst_108 : f32 to vector<1x10xf32>
      %241 = arith.mulf %240, %239 : vector<1x10xf32>
      %c0_109 = arith.constant 0 : index
      %c0_110 = arith.constant 0 : index
      %c0_111 = arith.constant 0 : index
      %242 = vector.load %arg25[%c0_109, %c0_110, %c0_111] : memref<1x1x10xf32, #tpu.memory_space<vmem>>, vector<1x1x10xf32>
      %243 = vector.shape_cast %242 : vector<1x1x10xf32> to vector<1x10xf32>
      %244 = vector.shape_cast %241 : vector<1x10xf32> to vector<1x1x10xf32>
      tpu.vector_store %arg25[%c0_109, %c0_110, %c0_111], %244 {strides = array<i32>} : memref<1x1x10xf32, #tpu.memory_space<vmem>>, vector<1x1x10xf32>,
    } else {
    }
    return
  }
  func.func @transform_0(%arg0: i32, %arg1: i32) -> (i32, i32, i32) {
    %c0_i32 = arith.constant 0 : i32
    %c0_i32_0 = arith.constant 0 : i32
    %c0_i32_1 = arith.constant 0 : i32
    return %arg0, %c0_i32, %c0_i32_0 : i32, i32, i32
  }
  func.func @transform_1(%arg0: i32, %arg1: i32) -> (i32, i32) {
    %c0_i32 = arith.constant 0 : i32
    %c0_i32_0 = arith.constant 0 : i32
    %c0_i32_1 = arith.constant 0 : i32
    return %c0_i32, %c0_i32_0 : i32, i32
  }
  func.func @transform_2(%arg0: i32, %arg1: i32) -> (i32, i32) {
    %c0_i32 = arith.constant 0 : i32
    %c0_i32_0 = arith.constant 0 : i32
    %c0_i32_1 = arith.constant 0 : i32
    return %c0_i32, %c0_i32_0 : i32, i32
  }
  func.func @transform_3(%arg0: i32, %arg1: i32) -> (i32, i32) {
    %c0_i32 = arith.constant 0 : i32
    %c0_i32_0 = arith.constant 0 : i32
    %c0_i32_1 = arith.constant 0 : i32
    return %c0_i32, %c0_i32_0 : i32, i32
  }
  func.func @transform_4(%arg0: i32, %arg1: i32) -> (i32, i32) {
    %c0_i32 = arith.constant 0 : i32
    %c0_i32_0 = arith.constant 0 : i32
    %c0_i32_1 = arith.constant 0 : i32
    return %c0_i32, %c0_i32_0 : i32, i32
  }
  func.func @transform_5(%arg0: i32, %arg1: i32) -> (i32, i32, i32) {
    %c0_i32 = arith.constant 0 : i32
    %c0_i32_0 = arith.constant 0 : i32
    %c0_i32_1 = arith.constant 0 : i32
    return %arg1, %c0_i32, %c0_i32_0 : i32, i32, i32
  }
  func.func @transform_6(%arg0: i32, %arg1: i32) -> (i32, i32, i32) {
    %c0_i32 = arith.constant 0 : i32
    %c0_i32_0 = arith.constant 0 : i32
    %c0_i32_1 = arith.constant 0 : i32
    return %arg1, %c0_i32, %c0_i32_0 : i32, i32, i32
  }
  func.func @transform_7(%arg0: i32, %arg1: i32) -> (i32, i32, i32) {
    %c0_i32 = arith.constant 0 : i32
    %c0_i32_0 = arith.constant 0 : i32
    %c0_i32_1 = arith.constant 0 : i32
    return %arg1, %c0_i32, %c0_i32_0 : i32, i32, i32
  }
  func.func @transform_8(%arg0: i32, %arg1: i32) -> (i32, i32, i32) {
    %c0_i32 = arith.constant 0 : i32
    %c0_i32_0 = arith.constant 0 : i32
    %c0_i32_1 = arith.constant 0 : i32
    return %arg1, %c0_i32, %c0_i32_0 : i32, i32, i32
  }
  func.func @transform_9(%arg0: i32, %arg1: i32) -> (i32, i32, i32) {
    %c0_i32 = arith.constant 0 : i32
    %c0_i32_0 = arith.constant 0 : i32
    %c0_i32_1 = arith.constant 0 : i32
    return %arg1, %c0_i32, %c0_i32_0 : i32, i32, i32
  }
  func.func @transform_10(%arg0: i32, %arg1: i32) -> (i32, i32, i32) {
    %c0_i32 = arith.constant 0 : i32
    %c0_i32_0 = arith.constant 0 : i32
    %c0_i32_1 = arith.constant 0 : i32
    return %arg1, %c0_i32, %c0_i32_0 : i32, i32, i32
  }
  func.func @transform_11(%arg0: i32, %arg1: i32) -> (i32, i32, i32) {
    %c0_i32 = arith.constant 0 : i32
    %c0_i32_0 = arith.constant 0 : i32
    %c0_i32_1 = arith.constant 0 : i32
    return %arg1, %c0_i32, %c0_i32_0 : i32, i32, i32
  }
  func.func @transform_12(%arg0: i32, %arg1: i32) -> (i32, i32, i32) {
    %c0_i32 = arith.constant 0 : i32
    %c0_i32_0 = arith.constant 0 : i32
    %c0_i32_1 = arith.constant 0 : i32
    return %arg1, %c0_i32, %c0_i32_0 : i32, i32, i32
  }
  func.func @transform_13(%arg0: i32, %arg1: i32) -> (i32, i32, i32) {
    %c0_i32 = arith.constant 0 : i32
    %c0_i32_0 = arith.constant 0 : i32
    %c0_i32_1 = arith.constant 0 : i32
    return %arg1, %c0_i32, %c0_i32_0 : i32, i32, i32
  }
  func.func @transform_14(%arg0: i32, %arg1: i32) -> (i32, i32, i32) {
    %c0_i32 = arith.constant 0 : i32
    %c0_i32_0 = arith.constant 0 : i32
    %c0_i32_1 = arith.constant 0 : i32
    return %arg1, %c0_i32, %c0_i32_0 : i32, i32, i32
  }
  func.func @transform_15(%arg0: i32, %arg1: i32) -> (i32, i32, i32) {
    %c0_i32 = arith.constant 0 : i32
    %c0_i32_0 = arith.constant 0 : i32
    %c0_i32_1 = arith.constant 0 : i32
    return %arg1, %c0_i32, %c0_i32_0 : i32, i32, i32
  }
  func.func @transform_16(%arg0: i32, %arg1: i32) -> (i32, i32, i32) {
    %c0_i32 = arith.constant 0 : i32
    %c0_i32_0 = arith.constant 0 : i32
    %c0_i32_1 = arith.constant 0 : i32
    return %arg1, %c0_i32, %c0_i32_0 : i32, i32, i32
  }
  func.func @transform_17(%arg0: i32, %arg1: i32) -> (i32, i32) {
    %c0_i32 = arith.constant 0 : i32
    %c0_i32_0 = arith.constant 0 : i32
    %c0_i32_1 = arith.constant 0 : i32
    return %c0_i32, %c0_i32_0 : i32, i32
  }
  func.func @transform_18(%arg0: i32, %arg1: i32) -> (i32, i32) {
    %c0_i32 = arith.constant 0 : i32
    %c0_i32_0 = arith.constant 0 : i32
    %c0_i32_1 = arith.constant 0 : i32
    return %c0_i32, %c0_i32_0 : i32, i32
  }
  func.func @transform_19(%arg0: i32, %arg1: i32) -> (i32, i32) {
    %c0_i32 = arith.constant 0 : i32
    %c0_i32_0 = arith.constant 0 : i32
    %c0_i32_1 = arith.constant 0 : i32
    return %c0_i32, %c0_i32_0 : i32, i32
  }
  func.func @transform_20(%arg0: i32, %arg1: i32) -> (i32, i32) {
    %c0_i32 = arith.constant 0 : i32
    %c0_i32_0 = arith.constant 0 : i32
    %c0_i32_1 = arith.constant 0 : i32
    return %c0_i32, %c0_i32_0 : i32, i32
  }
  func.func @transform_21(%arg0: i32, %arg1: i32) -> (i32, i32) {
    %c0_i32 = arith.constant 0 : i32
    %c0_i32_0 = arith.constant 0 : i32
    %c0_i32_1 = arith.constant 0 : i32
    return %c0_i32, %c0_i32_0 : i32, i32
  }
  func.func @transform_22(%arg0: i32, %arg1: i32) -> (i32, i32) {
    %c0_i32 = arith.constant 0 : i32
    %c0_i32_0 = arith.constant 0 : i32
    %c0_i32_1 = arith.constant 0 : i32
    return %c0_i32, %c0_i32_0 : i32, i32
  }
  func.func @transform_23(%arg0: i32, %arg1: i32) -> (i32, i32, i32) {
    %c0_i32 = arith.constant 0 : i32
    %c0_i32_0 = arith.constant 0 : i32
    %c0_i32_1 = arith.constant 0 : i32
    return %arg0, %c0_i32, %c0_i32_0 : i32, i32, i32
  }
}

</mosaic_0001>

<llo_original>
// kernel: vint_forward.1
$region0: #{vint_forward.1}
  #allocation0 [shape = 'u32[]', space=smem, size = 0x4, offset = 0x4, fixed_abs, tag = 'smem constant byte address 0x4 - core index']
  #allocation1 [shape = 'u32[144,128]{1,0:T(1,128)}', space=vmem, size = 0x12000, scoped, tag = 'internal scratch']
  #allocation2 [shape = 'f32[6,32]{1,0:T(8,128)}', space=vmem, size = 0x1000, scoped, tag = 'scratch operand']
  #allocation3 [shape = 'bf16[6,32]{1,0:T(8,128)(2,1)}', space=vmem, size = 0x800, scoped, tag = 'scratch operand']
  %s0 = inlined_call_operand.vmem [shape: f32[2,4,192], index: 0, kind: input, shape index: {}]
  %s1 = inlined_call_operand.vmem [shape: bf16[192,32], index: 1, kind: input, shape index: {}]
  %s2 = inlined_call_operand.vmem [shape: f32[1,32], index: 2, kind: input, shape index: {}]
  %s3 = inlined_call_operand.vmem [shape: f32[2,32], index: 3, kind: input, shape index: {}]
  %s4 = inlined_call_operand.vmem [shape: f32[6,32], index: 4, kind: input, shape index: {}]
  %s5 = inlined_call_operand.vmem [shape: f32[2,1,32], index: 5, kind: input, shape index: {}]
  %s6 = inlined_call_operand.vmem [shape: f32[2,1,32], index: 6, kind: input, shape index: {}]
  %s7 = inlined_call_operand.vmem [shape: bf16[2,32,96], index: 7, kind: input, shape index: {}]
  %s8 = inlined_call_operand.vmem [shape: f32[2,1,96], index: 8, kind: input, shape index: {}]
  %s9 = inlined_call_operand.vmem [shape: bf16[2,32,32], index: 9, kind: input, shape index: {}]
  %s10 = inlined_call_operand.vmem [shape: f32[2,1,32], index: 10, kind: input, shape index: {}]
  %s11 = inlined_call_operand.vmem [shape: f32[2,1,32], index: 11, kind: input, shape index: {}]
  %s12 = inlined_call_operand.vmem [shape: f32[2,1,32], index: 12, kind: input, shape index: {}]
  %s13 = inlined_call_operand.vmem [shape: bf16[2,32,128], index: 13, kind: input, shape index: {}]
  %s14 = inlined_call_operand.vmem [shape: f32[2,1,128], index: 14, kind: input, shape index: {}]
  %s15 = inlined_call_operand.vmem [shape: bf16[2,128,32], index: 15, kind: input, shape index: {}]
  %s16 = inlined_call_operand.vmem [shape: f32[2,1,32], index: 16, kind: input, shape index: {}]
  %s17 = inlined_call_operand.vmem [shape: f32[1,32], index: 17, kind: input, shape index: {}]
  %s18 = inlined_call_operand.vmem [shape: f32[1,32], index: 18, kind: input, shape index: {}]
  %s19 = inlined_call_operand.vmem [shape: bf16[32,10], index: 19, kind: input, shape index: {}]
  %s20 = inlined_call_operand.vmem [shape: f32[1,10], index: 20, kind: input, shape index: {}]
  %s21 = inlined_call_operand.vmem [shape: bf16[32,10], index: 21, kind: input, shape index: {}]
  %s22 = inlined_call_operand.vmem [shape: f32[1,10], index: 22, kind: input, shape index: {}]
  %s23 = inlined_call_operand.hbm [shape: f32[2,1,10], index: 23, kind: output, shape index: {}]
  %s24 = sld [smem:[#allocation0]]
  $region133: #{vint_forward.1} parent=0
    _
  %s26 = ssub.s32 1, %s24
  %s27 = scalar_select 0, %s26, %s24
  $region1: #{vint_forward.1} parent=0
    #allocation4 [shape = 'u8[1024]{0}', space=vmem, size = 0x400, scoped, tag = 'output window, operand 0']
    #allocation5 [shape = 's32[2]{0}', space=sflag, size = 0x8, scoped, tag = 'scoped memory for vint_forward.1']
    %28 = vsyncpa [#allocation5], 0
    %s29 = scalar_lea.sflag [#allocation5], 1
    %30 = vsyncpa %s29, 0
    loop: start=0, step=1, limit=6
    $region2: #{vint_forward.1} parent=1 // loop_pre_header
      _
    $region3: #{vint_forward.1} parent=1 // loop_header
      %s32 = sphi 0, %s36
      %p33 = scmp.ge.s32.totalorder %s32, 6
      %s39 = sphi 0, %s51
      %s40 = sphi 0, %s47
      %s41 = sphi 0, %s39
      %s42 = sphi 0, %s40
      %s43 = sphi 0, %s41
      %s44 = sphi 0, %s42
      %s54 = sphi 0, %s56
      %s57 = sphi 0, %s54
      %s58 = sphi 0, %s57
      %s74 = sphi 0, %s58
      %s78 = sphi 0, %s78
      %s80 = sphi 0, %s78
      %s81 = sphi 0, %s80
      %s95 = sphi 0, %s81
      %s99 = sphi 0, %s99
      %s101 = sphi 0, %s99
      %s102 = sphi 0, %s101
      %s116 = sphi 0, %s102
      %s120 = sphi 0, %s120
      %s122 = sphi 0, %s120
      %s123 = sphi 0, %s122
      %s137 = sphi 0, %s123
      %s141 = sphi 0, %s141
      %s143 = sphi 0, %s141
      %s144 = sphi 0, %s143
      %s158 = sphi 0, %s144
      %s164 = sphi 0, %s166
      %s167 = sphi 0, %s164
      %s168 = sphi 0, %s167
      %s184 = sphi 0, %s168
      %s190 = sphi 0, %s192
      %s193 = sphi 0, %s190
      %s194 = sphi 0, %s193
      %s210 = sphi 0, %s194
      %s216 = sphi 0, %s218
      %s219 = sphi 0, %s216
      %s220 = sphi 0, %s219
      %s236 = sphi 0, %s220
      %s242 = sphi 0, %s244
      %s245 = sphi 0, %s242
      %s246 = sphi 0, %s245
      %s262 = sphi 0, %s246
      %s268 = sphi 0, %s270
      %s271 = sphi 0, %s268
      %s272 = sphi 0, %s271
      %s288 = sphi 0, %s272
      %s294 = sphi 0, %s296
      %s297 = sphi 0, %s294
      %s298 = sphi 0, %s297
      %s314 = sphi 0, %s298
      %s320 = sphi 0, %s322
      %s323 = sphi 0, %s320
      %s324 = sphi 0, %s323
      %s340 = sphi 0, %s324
      %s346 = sphi 0, %s348
      %s349 = sphi 0, %s346
      %s350 = sphi 0, %s349
      %s366 = sphi 0, %s350
      %s372 = sphi 0, %s374
      %s375 = sphi 0, %s372
      %s376 = sphi 0, %s375
      %s392 = sphi 0, %s376
      %s398 = sphi 0, %s400
      %s401 = sphi 0, %s398
      %s402 = sphi 0, %s401
      %s418 = sphi 0, %s402
      %s424 = sphi 0, %s426
      %s427 = sphi 0, %s424
      %s428 = sphi 0, %s427
      %s444 = sphi 0, %s428
      %s450 = sphi 0, %s452
      %s453 = sphi 0, %s450
      %s454 = sphi 0, %s453
      %s470 = sphi 0, %s454
      %s474 = sphi 0, %s474
      %s476 = sphi 0, %s474
      %s477 = sphi 0, %s476
      %s491 = sphi 0, %s477
      %s495 = sphi 0, %s495
      %s497 = sphi 0, %s495
      %s498 = sphi 0, %s497
      %s512 = sphi 0, %s498
      %s516 = sphi 0, %s516
      %s518 = sphi 0, %s516
      %s519 = sphi 0, %s518
      %s533 = sphi 0, %s519
      %s537 = sphi 0, %s537
      %s539 = sphi 0, %s537
      %s540 = sphi 0, %s539
      %s554 = sphi 0, %s540
      %s558 = sphi 0, %s558
      %s560 = sphi 0, %s558
      %s561 = sphi 0, %s560
      %s575 = sphi 0, %s561
      %s579 = sphi 0, %s579
      %s581 = sphi 0, %s579
      %s582 = sphi 0, %s581
      %s596 = sphi 0, %s582
      %s602 = sphi 0, %s604
      %s605 = sphi 0, %s602
      %s606 = sphi 0, %s605
      %s622 = sphi 0, %s606
    $region4: #{vint_forward.1} parent=1 // loop_header_branch
      %35 = sbr.rel (%p33) target = $region8
    $region5: #{vint_forward.1} parent=1 // loop_body
      %s37 = ssub.s32 %s32, 1
      %s38 = ssub.s32 %s32, 2
      %s45 = sadd.s32 1, %s40
      %p46 = scmp.ge.s32.totalorder %s45, 2
      %s47 = scalar_select %p46, 0, %s45
      %s48 = sadd.s32 1, %s39
      %s49 = scalar_select %p46, %s48, %s39
      %p50 = scmp.ge.s32.totalorder %s49, 2
      %s51 = scalar_select %p50, 0, %s49
      %s52 = ssub.s32 %s39, %s51
      %p53 = scmp.eq.s32.totalorder %s52, 0
      %s55 = sadd.s32 %s54, 1
      %s56 = scalar_select %p53, %s54, %s55
      %p59 = pneg %p53
      %p60 = scmp.eq.s32.totalorder %s32, 3
      %p61 = por %p59, %p60
      %p62 = scmp.ne.s32.totalorder %s54, %s57
      %p63 = scmp.eq.s32.totalorder %s32, 0
      %p64 = por %p62, %p63
      %p65 = scmp.ne.s32.totalorder %s54, %s57
      %p66 = scmp.eq.s32.totalorder %s37, 3
      %p67 = por %p65, %p66
      %p68 = scmp.ne.s32.totalorder %s57, %s58
      %p69 = scmp.eq.s32.totalorder %s37, 0
      %p70 = por %p68, %p69
      %p71 = scmp.ne.s32.totalorder %s57, %s58
      %p72 = scmp.eq.s32.totalorder %s38, 3
      %p73 = por %p71, %p72
      %p75 = scmp.ne.s32.totalorder %s58, %s74
      %p76 = scmp.eq.s32.totalorder %s38, 0
      %p77 = por %p75, %p76
      %s79 = sadd.s32 %s78, 1
      %p82 = scmp.eq.s32.totalorder %s32, 3
      %p83 = scmp.ne.s32.totalorder %s78, %s80
      %p84 = scmp.eq.s32.totalorder %s32, 0
      %p85 = por %p83, %p84
      %p86 = scmp.ne.s32.totalorder %s78, %s80
      %p87 = scmp.eq.s32.totalorder %s37, 3
      %p88 = por %p86, %p87
      %p89 = scmp.ne.s32.totalorder %s80, %s81
      %p90 = scmp.eq.s32.totalorder %s37, 0
      %p91 = por %p89, %p90
      %p92 = scmp.ne.s32.totalorder %s80, %s81
      %p93 = scmp.eq.s32.totalorder %s38, 3
      %p94 = por %p92, %p93
      %p96 = scmp.ne.s32.totalorder %s81, %s95
      %p97 = scmp.eq.s32.totalorder %s38, 0
      %p98 = por %p96, %p97
      %s100 = sadd.s32 %s99, 1
      %p103 = scmp.eq.s32.totalorder %s32, 3
      %p104 = scmp.ne.s32.totalorder %s99, %s101
      %p105 = scmp.eq.s32.totalorder %s32, 0
      %p106 = por %p104, %p105
      %p107 = scmp.ne.s32.totalorder %s99, %s101
      %p108 = scmp.eq.s32.totalorder %s37, 3
      %p109 = por %p107, %p108
      %p110 = scmp.ne.s32.totalorder %s101, %s102
      %p111 = scmp.eq.s32.totalorder %s37, 0
      %p112 = por %p110, %p111
      %p113 = scmp.ne.s32.totalorder %s101, %s102
      %p114 = scmp.eq.s32.totalorder %s38, 3
      %p115 = por %p113, %p114
      %p117 = scmp.ne.s32.totalorder %s102, %s116
      %p118 = scmp.eq.s32.totalorder %s38, 0
      %p119 = por %p117, %p118
      %s121 = sadd.s32 %s120, 1
      %p124 = scmp.eq.s32.totalorder %s32, 3
      %p125 = scmp.ne.s32.totalorder %s120, %s122
      %p126 = scmp.eq.s32.totalorder %s32, 0
      %p127 = por %p125, %p126
      %p128 = scmp.ne.s32.totalorder %s120, %s122
      %p129 = scmp.eq.s32.totalorder %s37, 3
      %p130 = por %p128, %p129
      %p131 = scmp.ne.s32.totalorder %s122, %s123
      %p132 = scmp.eq.s32.totalorder %s37, 0
      %p133 = por %p131, %p132
      %p134 = scmp.ne.s32.totalorder %s122, %s123
      %p135 = scmp.eq.s32.totalorder %s38, 3
      %p136 = por %p134, %p135
      %p138 = scmp.ne.s32.totalorder %s123, %s137
      %p139 = scmp.eq.s32.totalorder %s38, 0
      %p140 = por %p138, %p139
      %s142 = sadd.s32 %s141, 1
      %p145 = scmp.eq.s32.totalorder %s32, 3
      %p146 = scmp.ne.s32.totalorder %s141, %s143
      %p147 = scmp.eq.s32.totalorder %s32, 0
      %p148 = por %p146, %p147
      %p149 = scmp.ne.s32.totalorder %s141, %s143
      %p150 = scmp.eq.s32.totalorder %s37, 3
      %p151 = por %p149, %p150
      %p152 = scmp.ne.s32.totalorder %s143, %s144
      %p153 = scmp.eq.s32.totalorder %s37, 0
      %p154 = por %p152, %p153
      %p155 = scmp.ne.s32.totalorder %s143, %s144
      %p156 = scmp.eq.s32.totalorder %s38, 3
      %p157 = por %p155, %p156
      %p159 = scmp.ne.s32.totalorder %s144, %s158
      %p160 = scmp.eq.s32.totalorder %s38, 0
      %p161 = por %p159, %p160
      %s162 = ssub.s32 %s40, %s47
      %p163 = scmp.eq.s32.totalorder %s162, 0
      %s165 = sadd.s32 %s164, 1
      %s166 = scalar_select %p163, %s164, %s165
      %p169 = pneg %p163
      %p170 = scmp.eq.s32.totalorder %s32, 3
      %p171 = por %p169, %p170
      %p172 = scmp.ne.s32.totalorder %s164, %s167
      %p173 = scmp.eq.s32.totalorder %s32, 0
      %p174 = por %p172, %p173
      %p175 = scmp.ne.s32.totalorder %s164, %s167
      %p176 = scmp.eq.s32.totalorder %s37, 3
      %p177 = por %p175, %p176
      %p178 = scmp.ne.s32.totalorder %s167, %s168
      %p179 = scmp.eq.s32.totalorder %s37, 0
      %p180 = por %p178, %p179
      %p181 = scmp.ne.s32.totalorder %s167, %s168
      %p182 = scmp.eq.s32.totalorder %s38, 3
      %p183 = por %p181, %p182
      %p185 = scmp.ne.s32.totalorder %s168, %s184
      %p186 = scmp.eq.s32.totalorder %s38, 0
      %p187 = por %p185, %p186
      %s188 = ssub.s32 %s40, %s47
      %p189 = scmp.eq.s32.totalorder %s188, 0
      %s191 = sadd.s32 %s190, 1
      %s192 = scalar_select %p189, %s190, %s191
      %p195 = pneg %p189
      %p196 = scmp.eq.s32.totalorder %s32, 3
      %p197 = por %p195, %p196
      %p198 = scmp.ne.s32.totalorder %s190, %s193
      %p199 = scmp.eq.s32.totalorder %s32, 0
      %p200 = por %p198, %p199
      %p201 = scmp.ne.s32.totalorder %s190, %s193
      %p202 = scmp.eq.s32.totalorder %s37, 3
      %p203 = por %p201, %p202
      %p204 = scmp.ne.s32.totalorder %s193, %s194
      %p205 = scmp.eq.s32.totalorder %s37, 0
      %p206 = por %p204, %p205
      %p207 = scmp.ne.s32.totalorder %s193, %s194
      %p208 = scmp.eq.s32.totalorder %s38, 3
      %p209 = por %p207, %p208
      %p211 = scmp.ne.s32.totalorder %s194, %s210
      %p212 = scmp.eq.s32.totalorder %s38, 0
      %p213 = por %p211, %p212
      %s214 = ssub.s32 %s40, %s47
      %p215 = scmp.eq.s32.totalorder %s214, 0
      %s217 = sadd.s32 %s216, 1
      %s218 = scalar_select %p215, %s216, %s217
      %p221 = pneg %p215
      %p222 = scmp.eq.s32.totalorder %s32, 3
      %p223 = por %p221, %p222
      %p224 = scmp.ne.s32.totalorder %s216, %s219
      %p225 = scmp.eq.s32.totalorder %s32, 0
      %p226 = por %p224, %p225
      %p227 = scmp.ne.s32.totalorder %s216, %s219
      %p228 = scmp.eq.s32.totalorder %s37, 3
      %p229 = por %p227, %p228
      %p230 = scmp.ne.s32.totalorder %s219, %s220
      %p231 = scmp.eq.s32.totalorder %s37, 0
      %p232 = por %p230, %p231
      %p233 = scmp.ne.s32.totalorder %s219, %s220
      %p234 = scmp.eq.s32.totalorder %s38, 3
      %p235 = por %p233, %p234
      %p237 = scmp.ne.s32.totalorder %s220, %s236
      %p238 = scmp.eq.s32.totalorder %s38, 0
      %p239 = por %p237, %p238
      %s240 = ssub.s32 %s40, %s47
      %p241 = scmp.eq.s32.totalorder %s240, 0
      %s243 = sadd.s32 %s242, 1
      %s244 = scalar_select %p241, %s242, %s243
      %p247 = pneg %p241
      %p248 = scmp.eq.s32.totalorder %s32, 3
      %p249 = por %p247, %p248
      %p250 = scmp.ne.s32.totalorder %s242, %s245
      %p251 = scmp.eq.s32.totalorder %s32, 0
      %p252 = por %p250, %p251
      %p253 = scmp.ne.s32.totalorder %s242, %s245
      %p254 = scmp.eq.s32.totalorder %s37, 3
      %p255 = por %p253, %p254
      %p256 = scmp.ne.s32.totalorder %s245, %s246
      %p257 = scmp.eq.s32.totalorder %s37, 0
      %p258 = por %p256, %p257
      %p259 = scmp.ne.s32.totalorder %s245, %s246
      %p260 = scmp.eq.s32.totalorder %s38, 3
      %p261 = por %p259, %p260
      %p263 = scmp.ne.s32.totalorder %s246, %s262
      %p264 = scmp.eq.s32.totalorder %s38, 0
      %p265 = por %p263, %p264
      %s266 = ssub.s32 %s40, %s47
      %p267 = scmp.eq.s32.totalorder %s266, 0
      %s269 = sadd.s32 %s268, 1
      %s270 = scalar_select %p267, %s268, %s269
      %p273 = pneg %p267
      %p274 = scmp.eq.s32.totalorder %s32, 3
      %p275 = por %p273, %p274
      %p276 = scmp.ne.s32.totalorder %s268, %s271
      %p277 = scmp.eq.s32.totalorder %s32, 0
      %p278 = por %p276, %p277
      %p279 = scmp.ne.s32.totalorder %s268, %s271
      %p280 = scmp.eq.s32.totalorder %s37, 3
      %p281 = por %p279, %p280
      %p282 = scmp.ne.s32.totalorder %s271, %s272
      %p283 = scmp.eq.s32.totalorder %s37, 0
      %p284 = por %p282, %p283
      %p285 = scmp.ne.s32.totalorder %s271, %s272
      %p286 = scmp.eq.s32.totalorder %s38, 3
      %p287 = por %p285, %p286
      %p289 = scmp.ne.s32.totalorder %s272, %s288
      %p290 = scmp.eq.s32.totalorder %s38, 0
      %p291 = por %p289, %p290
      %s292 = ssub.s32 %s40, %s47
      %p293 = scmp.eq.s32.totalorder %s292, 0
      %s295 = sadd.s32 %s294, 1
      %s296 = scalar_select %p293, %s294, %s295
      %p299 = pneg %p293
      %p300 = scmp.eq.s32.totalorder %s32, 3
      %p301 = por %p299, %p300
      %p302 = scmp.ne.s32.totalorder %s294, %s297
      %p303 = scmp.eq.s32.totalorder %s32, 0
      %p304 = por %p302, %p303
      %p305 = scmp.ne.s32.totalorder %s294, %s297
      %p306 = scmp.eq.s32.totalorder %s37, 3
      %p307 = por %p305, %p306
      %p308 = scmp.ne.s32.totalorder %s297, %s298
      %p309 = scmp.eq.s32.totalorder %s37, 0
      %p310 = por %p308, %p309
      %p311 = scmp.ne.s32.totalorder %s297, %s298
      %p312 = scmp.eq.s32.totalorder %s38, 3
      %p313 = por %p311, %p312
      %p315 = scmp.ne.s32.totalorder %s298, %s314
      %p316 = scmp.eq.s32.totalorder %s38, 0
      %p317 = por %p315, %p316
      %s318 = ssub.s32 %s40, %s47
      %p319 = scmp.eq.s32.totalorder %s318, 0
      %s321 = sadd.s32 %s320, 1
      %s322 = scalar_select %p319, %s320, %s321
      %p325 = pneg %p319
      %p326 = scmp.eq.s32.totalorder %s32, 3
      %p327 = por %p325, %p326
      %p328 = scmp.ne.s32.totalorder %s320, %s323
      %p329 = scmp.eq.s32.totalorder %s32, 0
      %p330 = por %p328, %p329
      %p331 = scmp.ne.s32.totalorder %s320, %s323
      %p332 = scmp.eq.s32.totalorder %s37, 3
      %p333 = por %p331, %p332
      %p334 = scmp.ne.s32.totalorder %s323, %s324
      %p335 = scmp.eq.s32.totalorder %s37, 0
      %p336 = por %p334, %p335
      %p337 = scmp.ne.s32.totalorder %s323, %s324
      %p338 = scmp.eq.s32.totalorder %s38, 3
      %p339 = por %p337, %p338
      %p341 = scmp.ne.s32.totalorder %s324, %s340
      %p342 = scmp.eq.s32.totalorder %s38, 0
      %p343 = por %p341, %p342
      %s344 = ssub.s32 %s40, %s47
      %p345 = scmp.eq.s32.totalorder %s344, 0
      %s347 = sadd.s32 %s346, 1
      %s348 = scalar_select %p345, %s346, %s347
      %p351 = pneg %p345
      %p352 = scmp.eq.s32.totalorder %s32, 3
      %p353 = por %p351, %p352
      %p354 = scmp.ne.s32.totalorder %s346, %s349
      %p355 = scmp.eq.s32.totalorder %s32, 0
      %p356 = por %p354, %p355
      %p357 = scmp.ne.s32.totalorder %s346, %s349
      %p358 = scmp.eq.s32.totalorder %s37, 3
      %p359 = por %p357, %p358
      %p360 = scmp.ne.s32.totalorder %s349, %s350
      %p361 = scmp.eq.s32.totalorder %s37, 0
      %p362 = por %p360, %p361
      %p363 = scmp.ne.s32.totalorder %s349, %s350
      %p364 = scmp.eq.s32.totalorder %s38, 3
      %p365 = por %p363, %p364
      %p367 = scmp.ne.s32.totalorder %s350, %s366
      %p368 = scmp.eq.s32.totalorder %s38, 0
      %p369 = por %p367, %p368
      %s370 = ssub.s32 %s40, %s47
      %p371 = scmp.eq.s32.totalorder %s370, 0
      %s373 = sadd.s32 %s372, 1
      %s374 = scalar_select %p371, %s372, %s373
      %p377 = pneg %p371
      %p378 = scmp.eq.s32.totalorder %s32, 3
      %p379 = por %p377, %p378
      %p380 = scmp.ne.s32.totalorder %s372, %s375
      %p381 = scmp.eq.s32.totalorder %s32, 0
      %p382 = por %p380, %p381
      %p383 = scmp.ne.s32.totalorder %s372, %s375
      %p384 = scmp.eq.s32.totalorder %s37, 3
      %p385 = por %p383, %p384
      %p386 = scmp.ne.s32.totalorder %s375, %s376
      %p387 = scmp.eq.s32.totalorder %s37, 0
      %p388 = por %p386, %p387
      %p389 = scmp.ne.s32.totalorder %s375, %s376
      %p390 = scmp.eq.s32.totalorder %s38, 3
      %p391 = por %p389, %p390
      %p393 = scmp.ne.s32.totalorder %s376, %s392
      %p394 = scmp.eq.s32.totalorder %s38, 0
      %p395 = por %p393, %p394
      %s396 = ssub.s32 %s40, %s47
      %p397 = scmp.eq.s32.totalorder %s396, 0
      %s399 = sadd.s32 %s398, 1
      %s400 = scalar_select %p397, %s398, %s399
      %p403 = pneg %p397
      %p404 = scmp.eq.s32.totalorder %s32, 3
      %p405 = por %p403, %p404
      %p406 = scmp.ne.s32.totalorder %s398, %s401
      %p407 = scmp.eq.s32.totalorder %s32, 0
      %p408 = por %p406, %p407
      %p409 = scmp.ne.s32.totalorder %s398, %s401
      %p410 = scmp.eq.s32.totalorder %s37, 3
      %p411 = por %p409, %p410
      %p412 = scmp.ne.s32.totalorder %s401, %s402
      %p413 = scmp.eq.s32.totalorder %s37, 0
      %p414 = por %p412, %p413
      %p415 = scmp.ne.s32.totalorder %s401, %s402
      %p416 = scmp.eq.s32.totalorder %s38, 3
      %p417 = por %p415, %p416
      %p419 = scmp.ne.s32.totalorder %s402, %s418
      %p420 = scmp.eq.s32.totalorder %s38, 0
      %p421 = por %p419, %p420
      %s422 = ssub.s32 %s40, %s47
      %p423 = scmp.eq.s32.totalorder %s422, 0
      %s425 = sadd.s32 %s424, 1
      %s426 = scalar_select %p423, %s424, %s425
      %p429 = pneg %p423
      %p430 = scmp.eq.s32.totalorder %s32, 3
      %p431 = por %p429, %p430
      %p432 = scmp.ne.s32.totalorder %s424, %s427
      %p433 = scmp.eq.s32.totalorder %s32, 0
      %p434 = por %p432, %p433
      %p435 = scmp.ne.s32.totalorder %s424, %s427
      %p436 = scmp.eq.s32.totalorder %s37, 3
      %p437 = por %p435, %p436
      %p438 = scmp.ne.s32.totalorder %s427, %s428
      %p439 = scmp.eq.s32.totalorder %s37, 0
      %p440 = por %p438, %p439
      %p441 = scmp.ne.s32.totalorder %s427, %s428
      %p442 = scmp.eq.s32.totalorder %s38, 3
      %p443 = por %p441, %p442
      %p445 = scmp.ne.s32.totalorder %s428, %s444
      %p446 = scmp.eq.s32.totalorder %s38, 0
      %p447 = por %p445, %p446
      %s448 = ssub.s32 %s40, %s47
      %p449 = scmp.eq.s32.totalorder %s448, 0
      %s451 = sadd.s32 %s450, 1
      %s452 = scalar_select %p449, %s450, %s451
      %p455 = pneg %p449
      %p456 = scmp.eq.s32.totalorder %s32, 3
      %p457 = por %p455, %p456
      %p458 = scmp.ne.s32.totalorder %s450, %s453
      %p459 = scmp.eq.s32.totalorder %s32, 0
      %p460 = por %p458, %p459
      %p461 = scmp.ne.s32.totalorder %s450, %s453
      %p462 = scmp.eq.s32.totalorder %s37, 3
      %p463 = por %p461, %p462
      %p464 = scmp.ne.s32.totalorder %s453, %s454
      %p465 = scmp.eq.s32.totalorder %s37, 0
      %p466 = por %p464, %p465
      %p467 = scmp.ne.s32.totalorder %s453, %s454
      %p468 = scmp.eq.s32.totalorder %s38, 3
      %p469 = por %p467, %p468
      %p471 = scmp.ne.s32.totalorder %s454, %s470
      %p472 = scmp.eq.s32.totalorder %s38, 0
      %p473 = por %p471, %p472
      %s475 = sadd.s32 %s474, 1
      %p478 = scmp.eq.s32.totalorder %s32, 3
      %p479 = scmp.ne.s32.totalorder %s474, %s476
      %p480 = scmp.eq.s32.totalorder %s32, 0
      %p481 = por %p479, %p480
      %p482 = scmp.ne.s32.totalorder %s474, %s476
      %p483 = scmp.eq.s32.totalorder %s37, 3
      %p484 = por %p482, %p483
      %p485 = scmp.ne.s32.totalorder %s476, %s477
      %p486 = scmp.eq.s32.totalorder %s37, 0
      %p487 = por %p485, %p486
      %p488 = scmp.ne.s32.totalorder %s476, %s477
      %p489 = scmp.eq.s32.totalorder %s38, 3
      %p490 = por %p488, %p489
      %p492 = scmp.ne.s32.totalorder %s477, %s491
      %p493 = scmp.eq.s32.totalorder %s38, 0
      %p494 = por %p492, %p493
      %s496 = sadd.s32 %s495, 1
      %p499 = scmp.eq.s32.totalorder %s32, 3
      %p500 = scmp.ne.s32.totalorder %s495, %s497
      %p501 = scmp.eq.s32.totalorder %s32, 0
      %p502 = por %p500, %p501
      %p503 = scmp.ne.s32.totalorder %s495, %s497
      %p504 = scmp.eq.s32.totalorder %s37, 3
      %p505 = por %p503, %p504
      %p506 = scmp.ne.s32.totalorder %s497, %s498
      %p507 = scmp.eq.s32.totalorder %s37, 0
      %p508 = por %p506, %p507
      %p509 = scmp.ne.s32.totalorder %s497, %s498
      %p510 = scmp.eq.s32.totalorder %s38, 3
      %p511 = por %p509, %p510
      %p513 = scmp.ne.s32.totalorder %s498, %s512
      %p514 = scmp.eq.s32.totalorder %s38, 0
      %p515 = por %p513, %p514
      %s517 = sadd.s32 %s516, 1
      %p520 = scmp.eq.s32.totalorder %s32, 3
      %p521 = scmp.ne.s32.totalorder %s516, %s518
      %p522 = scmp.eq.s32.totalorder %s32, 0
      %p523 = por %p521, %p522
      %p524 = scmp.ne.s32.totalorder %s516, %s518
      %p525 = scmp.eq.s32.totalorder %s37, 3
      %p526 = por %p524, %p525
      %p527 = scmp.ne.s32.totalorder %s518, %s519
      %p528 = scmp.eq.s32.totalorder %s37, 0
      %p529 = por %p527, %p528
      %p530 = scmp.ne.s32.totalorder %s518, %s519
      %p531 = scmp.eq.s32.totalorder %s38, 3
      %p532 = por %p530, %p531
      %p534 = scmp.ne.s32.totalorder %s519, %s533
      %p535 = scmp.eq.s32.totalorder %s38, 0
      %p536 = por %p534, %p535
      %s538 = sadd.s32 %s537, 1
      %p541 = scmp.eq.s32.totalorder %s32, 3
      %p542 = scmp.ne.s32.totalorder %s537, %s539
      %p543 = scmp.eq.s32.totalorder %s32, 0
      %p544 = por %p542, %p543
      %p545 = scmp.ne.s32.totalorder %s537, %s539
      %p546 = scmp.eq.s32.totalorder %s37, 3
      %p547 = por %p545, %p546
      %p548 = scmp.ne.s32.totalorder %s539, %s540
      %p549 = scmp.eq.s32.totalorder %s37, 0
      %p550 = por %p548, %p549
      %p551 = scmp.ne.s32.totalorder %s539, %s540
      %p552 = scmp.eq.s32.totalorder %s38, 3
      %p553 = por %p551, %p552
      %p555 = scmp.ne.s32.totalorder %s540, %s554
      %p556 = scmp.eq.s32.totalorder %s38, 0
      %p557 = por %p555, %p556
      %s559 = sadd.s32 %s558, 1
      %p562 = scmp.eq.s32.totalorder %s32, 3
      %p563 = scmp.ne.s32.totalorder %s558, %s560
      %p564 = scmp.eq.s32.totalorder %s32, 0
      %p565 = por %p563, %p564
      %p566 = scmp.ne.s32.totalorder %s558, %s560
      %p567 = scmp.eq.s32.totalorder %s37, 3
      %p568 = por %p566, %p567
      %p569 = scmp.ne.s32.totalorder %s560, %s561
      %p570 = scmp.eq.s32.totalorder %s37, 0
      %p571 = por %p569, %p570
      %p572 = scmp.ne.s32.totalorder %s560, %s561
      %p573 = scmp.eq.s32.totalorder %s38, 3
      %p574 = por %p572, %p573
      %p576 = scmp.ne.s32.totalorder %s561, %s575
      %p577 = scmp.eq.s32.totalorder %s38, 0
      %p578 = por %p576, %p577
      %s580 = sadd.s32 %s579, 1
      %p583 = scmp.eq.s32.totalorder %s32, 3
      %p584 = scmp.ne.s32.totalorder %s579, %s581
      %p585 = scmp.eq.s32.totalorder %s32, 0
      %p586 = por %p584, %p585
      %p587 = scmp.ne.s32.totalorder %s579, %s581
      %p588 = scmp.eq.s32.totalorder %s37, 3
      %p589 = por %p587, %p588
      %p590 = scmp.ne.s32.totalorder %s581, %s582
      %p591 = scmp.eq.s32.totalorder %s37, 0
      %p592 = por %p590, %p591
      %p593 = scmp.ne.s32.totalorder %s581, %s582
      %p594 = scmp.eq.s32.totalorder %s38, 3
      %p595 = por %p593, %p594
      %p597 = scmp.ne.s32.totalorder %s582, %s596
      %p598 = scmp.eq.s32.totalorder %s38, 0
      %p599 = por %p597, %p598
      %s600 = ssub.s32 %s39, %s51
      %p601 = scmp.eq.s32.totalorder %s600, 0
      %s603 = sadd.s32 %s602, 1
      %s604 = scalar_select %p601, %s602, %s603
      %p607 = pneg %p601
      %p608 = scmp.eq.s32.totalorder %s32, 3
      %p609 = por %p607, %p608
      %p610 = scmp.ne.s32.totalorder %s602, %s605
      %p611 = scmp.eq.s32.totalorder %s32, 0
      %p612 = por %p610, %p611
      %p613 = scmp.ne.s32.totalorder %s602, %s605
      %p614 = scmp.eq.s32.totalorder %s37, 3
      %p615 = por %p613, %p614
      %p616 = scmp.ne.s32.totalorder %s605, %s606
      %p617 = scmp.eq.s32.totalorder %s37, 0
      %p618 = por %p616, %p617
      %p619 = scmp.ne.s32.totalorder %s605, %s606
      %p620 = scmp.eq.s32.totalorder %s38, 3
      %p621 = por %p619, %p620
      %p623 = scmp.ne.s32.totalorder %s606, %s622
      %p624 = scmp.eq.s32.totalorder %s38, 0
      %p625 = por %p623, %p624
      %p626 = scmp.le.s32.totalorder 1, %s32
      %p627 = scmp.lt.s32.totalorder %s32, 5
      %p628 = pnand %p626, %p627
      %p629 = pneg %p628
      // Predicated region
      $region9: #{vint_forward.1} parent=5 // pred_check
        _
      $region10: #{vint_forward.1} parent=5 // pred_check_branch
        %631 = sbr.rel (%p628) target = $region12
      $region11: #{vint_forward.1} parent=5 // pred_region
        %s632 = ssub.s32 %s32, 1
        // Predicated region
        $region13: #{vint_forward.1} parent=11 // pred_check
          %p633 = pneg %p91
        $region14: #{vint_forward.1} parent=11 // pred_check_branch
          %635 = sbr.rel (%p633) target = $region16
        $region15: #{vint_forward.1} parent=11 // pred_region
          _
        $region16: #{vint_forward.1} parent=11 // pred_fallthru
          _
        // Predicated region
        $region17: #{vint_forward.1} parent=11 // pred_check
          %p636 = pneg %p112
        $region18: #{vint_forward.1} parent=11 // pred_check_branch
          %638 = sbr.rel (%p636) target = $region20
        $region19: #{vint_forward.1} parent=11 // pred_region
          _
        $region20: #{vint_forward.1} parent=11 // pred_fallthru
          _
        // Predicated region
        $region21: #{vint_forward.1} parent=11 // pred_check
          %p639 = pneg %p133
        $region22: #{vint_forward.1} parent=11 // pred_check_branch
          %641 = sbr.rel (%p639) target = $region24
        $region23: #{vint_forward.1} parent=11 // pred_region
          _
        $region24: #{vint_forward.1} parent=11 // pred_fallthru
          _
        // Predicated region
        $region25: #{vint_forward.1} parent=11 // pred_check
          %p642 = pneg %p154
        $region26: #{vint_forward.1} parent=11 // pred_check_branch
          %644 = sbr.rel (%p642) target = $region28
        $region27: #{vint_forward.1} parent=11 // pred_region
          _
        $region28: #{vint_forward.1} parent=11 // pred_fallthru
          _
        // Predicated region
        $region29: #{vint_forward.1} parent=11 // pred_check
          %p645 = pneg %p487
        $region30: #{vint_forward.1} parent=11 // pred_check_branch
          %647 = sbr.rel (%p645) target = $region32
        $region31: #{vint_forward.1} parent=11 // pred_region
          _
        $region32: #{vint_forward.1} parent=11 // pred_fallthru
          _
        // Predicated region
        $region33: #{vint_forward.1} parent=11 // pred_check
          %p648 = pneg %p508
        $region34: #{vint_forward.1} parent=11 // pred_check_branch
          %650 = sbr.rel (%p648) target = $region36
        $region35: #{vint_forward.1} parent=11 // pred_region
          _
        $region36: #{vint_forward.1} parent=11 // pred_fallthru
          _
        // Predicated region
        $region37: #{vint_forward.1} parent=11 // pred_check
          %p651 = pneg %p529
        $region38: #{vint_forward.1} parent=11 // pred_check_branch
          %653 = sbr.rel (%p651) target = $region40
        $region39: #{vint_forward.1} parent=11 // pred_region
          _
        $region40: #{vint_forward.1} parent=11 // pred_fallthru
          _
        // Predicated region
        $region41: #{vint_forward.1} parent=11 // pred_check
          %p654 = pneg %p550
        $region42: #{vint_forward.1} parent=11 // pred_check_branch
          %656 = sbr.rel (%p654) target = $region44
        $region43: #{vint_forward.1} parent=11 // pred_region
          _
        $region44: #{vint_forward.1} parent=11 // pred_fallthru
          _
        // Predicated region
        $region45: #{vint_forward.1} parent=11 // pred_check
          %p657 = pneg %p571
        $region46: #{vint_forward.1} parent=11 // pred_check_branch
          %659 = sbr.rel (%p657) target = $region48
        $region47: #{vint_forward.1} parent=11 // pred_region
          _
        $region48: #{vint_forward.1} parent=11 // pred_fallthru
          _
        // Predicated region
        $region49: #{vint_forward.1} parent=11 // pred_check
          %p660 = pneg %p592
        $region50: #{vint_forward.1} parent=11 // pred_check_branch
          %662 = sbr.rel (%p660) target = $region52
        $region51: #{vint_forward.1} parent=11 // pred_region
          _
        $region52: #{vint_forward.1} parent=11 // pred_fallthru
          _
      $region12: #{vint_forward.1} parent=5 // pred_fallthru
        _
      %p663 = scmp.lt.s32.totalorder %s32, 4
      // Predicated region
      $region53: #{vint_forward.1} parent=5 // pred_check
        %p664 = pneg %p663
      $region54: #{vint_forward.1} parent=5 // pred_check_branch
        %666 = sbr.rel (%p664) target = $region56
      $region55: #{vint_forward.1} parent=5 // pred_region
        // Predicated region
        $region57: #{vint_forward.1} parent=55 // pred_check
          %p667 = pneg %p64
        $region58: #{vint_forward.1} parent=55 // pred_check_branch
          %669 = sbr.rel (%p667) target = $region60
        $region59: #{vint_forward.1} parent=55 // pred_region
          %p670 = scmp.lt.s32.totalorder %s39, 1
          %s671 = scalar_select %p670, %s39, 1
          %s672 = smul.addr %s671, 2
          %s673 = smul.addr %s672, 4
          %s674 = scalar_lea.vmem %s0, %s673
        $region60: #{vint_forward.1} parent=55 // pred_fallthru
          _
        // Predicated region
        $region61: #{vint_forward.1} parent=55 // pred_check
          %p675 = pneg %p174
        $region62: #{vint_forward.1} parent=55 // pred_check_branch
          %677 = sbr.rel (%p675) target = $region64
        $region63: #{vint_forward.1} parent=55 // pred_region
          %p678 = scmp.lt.s32.totalorder %s40, 1
          %s679 = scalar_select %p678, %s40, 1
          %s680 = scalar_lea.vmem %s5, %s679
        $region64: #{vint_forward.1} parent=55 // pred_fallthru
          _
        // Predicated region
        $region65: #{vint_forward.1} parent=55 // pred_check
          %p681 = pneg %p200
        $region66: #{vint_forward.1} parent=55 // pred_check_branch
          %683 = sbr.rel (%p681) target = $region68
        $region67: #{vint_forward.1} parent=55 // pred_region
          %p684 = scmp.lt.s32.totalorder %s40, 1
          %s685 = scalar_select %p684, %s40, 1
          %s686 = scalar_lea.vmem %s6, %s685
        $region68: #{vint_forward.1} parent=55 // pred_fallthru
          _
        // Predicated region
        $region69: #{vint_forward.1} parent=55 // pred_check
          %p687 = pneg %p226
        $region70: #{vint_forward.1} parent=55 // pred_check_branch
          %689 = sbr.rel (%p687) target = $region72
        $region71: #{vint_forward.1} parent=55 // pred_region
          %p690 = scmp.lt.s32.totalorder %s40, 1
          %s691 = scalar_select %p690, %s40, 1
          %s692 = smul.addr %s691, 4
          %s693 = smul.addr %s692, 4
          %s694 = scalar_lea.vmem %s7, %s693
        $region72: #{vint_forward.1} parent=55 // pred_fallthru
          _
        // Predicated region
        $region73: #{vint_forward.1} parent=55 // pred_check
          %p695 = pneg %p252
        $region74: #{vint_forward.1} parent=55 // pred_check_branch
          %697 = sbr.rel (%p695) target = $region76
        $region75: #{vint_forward.1} parent=55 // pred_region
          %p698 = scmp.lt.s32.totalorder %s40, 1
          %s699 = scalar_select %p698, %s40, 1
          %s700 = scalar_lea.vmem %s8, %s699
        $region76: #{vint_forward.1} parent=55 // pred_fallthru
          _
        // Predicated region
        $region77: #{vint_forward.1} parent=55 // pred_check
          %p701 = pneg %p278
        $region78: #{vint_forward.1} parent=55 // pred_check_branch
          %703 = sbr.rel (%p701) target = $region80
        $region79: #{vint_forward.1} parent=55 // pred_region
          %p704 = scmp.lt.s32.totalorder %s40, 1
          %s705 = scalar_select %p704, %s40, 1
          %s706 = smul.addr %s705, 4
          %s707 = smul.addr %s706, 4
          %s708 = scalar_lea.vmem %s9, %s707
        $region80: #{vint_forward.1} parent=55 // pred_fallthru
          _
        // Predicated region
        $region81: #{vint_forward.1} parent=55 // pred_check
          %p709 = pneg %p304
        $region82: #{vint_forward.1} parent=55 // pred_check_branch
          %711 = sbr.rel (%p709) target = $region84
        $region83: #{vint_forward.1} parent=55 // pred_region
          %p712 = scmp.lt.s32.totalorder %s40, 1
          %s713 = scalar_select %p712, %s40, 1
          %s714 = scalar_lea.vmem %s10, %s713
        $region84: #{vint_forward.1} parent=55 // pred_fallthru
          _
        // Predicated region
        $region85: #{vint_forward.1} parent=55 // pred_check
          %p715 = pneg %p330
        $region86: #{vint_forward.1} parent=55 // pred_check_branch
          %717 = sbr.rel (%p715) target = $region88
        $region87: #{vint_forward.1} parent=55 // pred_region
          %p718 = scmp.lt.s32.totalorder %s40, 1
          %s719 = scalar_select %p718, %s40, 1
          %s720 = scalar_lea.vmem %s11, %s719
        $region88: #{vint_forward.1} parent=55 // pred_fallthru
          _
        // Predicated region
        $region89: #{vint_forward.1} parent=55 // pred_check
          %p721 = pneg %p356
        $region90: #{vint_forward.1} parent=55 // pred_check_branch
          %723 = sbr.rel (%p721) target = $region92
        $region91: #{vint_forward.1} parent=55 // pred_region
          %p724 = scmp.lt.s32.totalorder %s40, 1
          %s725 = scalar_select %p724, %s40, 1
          %s726 = scalar_lea.vmem %s12, %s725
        $region92: #{vint_forward.1} parent=55 // pred_fallthru
          _
        // Predicated region
        $region93: #{vint_forward.1} parent=55 // pred_check
          %p727 = pneg %p382
        $region94: #{vint_forward.1} parent=55 // pred_check_branch
          %729 = sbr.rel (%p727) target = $region96
        $region95: #{vint_forward.1} parent=55 // pred_region
          %p730 = scmp.lt.s32.totalorder %s40, 1
          %s731 = scalar_select %p730, %s40, 1
          %s732 = smul.addr %s731, 4
          %s733 = smul.addr %s732, 4
          %s734 = scalar_lea.vmem %s13, %s733
        $region96: #{vint_forward.1} parent=55 // pred_fallthru
          _
        // Predicated region
        $region97: #{vint_forward.1} parent=55 // pred_check
          %p735 = pneg %p408
        $region98: #{vint_forward.1} parent=55 // pred_check_branch
          %737 = sbr.rel (%p735) target = $region100
        $region99: #{vint_forward.1} parent=55 // pred_region
          %p738 = scmp.lt.s32.totalorder %s40, 1
          %s739 = scalar_select %p738, %s40, 1
          %s740 = scalar_lea.vmem %s14, %s739
        $region100: #{vint_forward.1} parent=55 // pred_fallthru
          _
        // Predicated region
        $region101: #{vint_forward.1} parent=55 // pred_check
          %p741 = pneg %p434
        $region102: #{vint_forward.1} parent=55 // pred_check_branch
          %743 = sbr.rel (%p741) target = $region104
        $region103: #{vint_forward.1} parent=55 // pred_region
          %p744 = scmp.lt.s32.totalorder %s40, 1
          %s745 = scalar_select %p744, %s40, 1
          %s746 = smul.addr %s745, 16
          %s747 = smul.addr %s746, 4
          %s748 = scalar_lea.vmem %s15, %s747
        $region104: #{vint_forward.1} parent=55 // pred_fallthru
          _
        // Predicated region
        $region105: #{vint_forward.1} parent=55 // pred_check
          %p749 = pneg %p460
        $region106: #{vint_forward.1} parent=55 // pred_check_branch
          %751 = sbr.rel (%p749) target = $region108
        $region107: #{vint_forward.1} parent=55 // pred_region
          %p752 = scmp.lt.s32.totalorder %s40, 1
          %s753 = scalar_select %p752, %s40, 1
          %s754 = scalar_lea.vmem %s16, %s753
        $region108: #{vint_forward.1} parent=55 // pred_fallthru
          _
      $region56: #{vint_forward.1} parent=5 // pred_fallthru
        _
      %p755 = scmp.le.s32.totalorder 1, %s32
      %p756 = scmp.lt.s32.totalorder %s32, 5
      %p757 = pnand %p755, %p756
      %p758 = pneg %p757
      // Predicated region
      $region109: #{vint_forward.1} parent=5 // pred_check
        _
      $region110: #{vint_forward.1} parent=5 // pred_check_branch
        %760 = sbr.rel (%p757) target = $region112
      $region111: #{vint_forward.1} parent=5 // pred_region
        %s761 = ssub.s32 %s32, 1
        %p762 = scmp.lt.s32.totalorder %s41, 1
        %s763 = scalar_select %p762, %s41, 1
        %s764 = smul.addr %s763, 2
        %s765 = smul.addr %s764, 4
        %s766 = scalar_lea.vmem %s0, %s765
        %p767 = pneg %p70
        %p768 = pneg %p67
        %p769 = pneg %p91
        %p770 = pneg %p88
        %p771 = pneg %p112
        %p772 = pneg %p109
        %p773 = pneg %p133
        %p774 = pneg %p130
        %p775 = pneg %p154
        %p776 = pneg %p151
        %p777 = scmp.lt.s32.totalorder %s42, 1
        %s778 = scalar_select %p777, %s42, 1
        %s779 = scalar_lea.vmem %s5, %s778
        %p780 = pneg %p180
        %p781 = pneg %p177
        %p782 = scmp.lt.s32.totalorder %s42, 1
        %s783 = scalar_select %p782, %s42, 1
        %s784 = scalar_lea.vmem %s6, %s783
        %p785 = pneg %p206
        %p786 = pneg %p203
        %p787 = scmp.lt.s32.totalorder %s42, 1
        %s788 = scalar_select %p787, %s42, 1
        %s789 = smul.addr %s788, 4
        %s790 = smul.addr %s789, 4
        %s791 = scalar_lea.vmem %s7, %s790
        %p792 = pneg %p232
        %p793 = pneg %p229
        %p794 = scmp.lt.s32.totalorder %s42, 1
        %s795 = scalar_select %p794, %s42, 1
        %s796 = scalar_lea.vmem %s8, %s795
        %p797 = pneg %p258
        %p798 = pneg %p255
        %p799 = scmp.lt.s32.totalorder %s42, 1
        %s800 = scalar_select %p799, %s42, 1
        %s801 = smul.addr %s800, 4
        %s802 = smul.addr %s801, 4
        %s803 = scalar_lea.vmem %s9, %s802
        %p804 = pneg %p284
        %p805 = pneg %p281
        %p806 = scmp.lt.s32.totalorder %s42, 1
        %s807 = scalar_select %p806, %s42, 1
        %s808 = scalar_lea.vmem %s10, %s807
        %p809 = pneg %p310
        %p810 = pneg %p307
        %p811 = scmp.lt.s32.totalorder %s42, 1
        %s812 = scalar_select %p811, %s42, 1
        %s813 = scalar_lea.vmem %s11, %s812
        %p814 = pneg %p336
        %p815 = pneg %p333
        %p816 = scmp.lt.s32.totalorder %s42, 1
        %s817 = scalar_select %p816, %s42, 1
        %s818 = scalar_lea.vmem %s12, %s817
        %p819 = pneg %p362
        %p820 = pneg %p359
        %p821 = scmp.lt.s32.totalorder %s42, 1
        %s822 = scalar_select %p821, %s42, 1
        %s823 = smul.addr %s822, 4
        %s824 = smul.addr %s823, 4
        %s825 = scalar_lea.vmem %s13, %s824
        %p826 = pneg %p388
        %p827 = pneg %p385
        %p828 = scmp.lt.s32.totalorder %s42, 1
        %s829 = scalar_select %p828, %s42, 1
        %s830 = scalar_lea.vmem %s14, %s829
        %p831 = pneg %p414
        %p832 = pneg %p411
        %p833 = scmp.lt.s32.totalorder %s42, 1
        %s834 = scalar_select %p833, %s42, 1
        %s835 = smul.addr %s834, 16
        %s836 = smul.addr %s835, 4
        %s837 = scalar_lea.vmem %s15, %s836
        %p838 = pneg %p440
        %p839 = pneg %p437
        %p840 = scmp.lt.s32.totalorder %s42, 1
        %s841 = scalar_select %p840, %s42, 1
        %s842 = scalar_lea.vmem %s16, %s841
        %p843 = pneg %p466
        %p844 = pneg %p463
        %p845 = pneg %p487
        %p846 = pneg %p484
        %p847 = pneg %p508
        %p848 = pneg %p505
        %p849 = pneg %p529
        %p850 = pneg %p526
        %p851 = pneg %p550
        %p852 = pneg %p547
        %p853 = pneg %p571
        %p854 = pneg %p568
        %p855 = pneg %p592
        %p856 = pneg %p589
        %p857 = pneg %p618
        %p858 = pneg %p615
        %s859 = sand.u32 %s605, 1
        %s860 = scalar_lea.sflag [#allocation5], %s859
        %s861 = sand.u32 %s605, 1
        %s862 = scalar_lea.vmem [#allocation4], %s861
        %p863 = scmp.lt.s32.totalorder %s41, 1
        %s864 = scalar_select %p863, %s41, 1
        %s865 = smul.addr %s864, 2
        %s866 = smul.addr %s865, 4
        %s867 = scalar_lea.vmem %s0, %s866
        %p868 = scmp.lt.s32.totalorder %s42, 1
        %s869 = scalar_select %p868, %s42, 1
        %s870 = scalar_lea.vmem %s5, %s869
        %p871 = scmp.lt.s32.totalorder %s42, 1
        %s872 = scalar_select %p871, %s42, 1
        %s873 = scalar_lea.vmem %s6, %s872
        %p874 = scmp.lt.s32.totalorder %s42, 1
        %s875 = scalar_select %p874, %s42, 1
        %s876 = smul.addr %s875, 4
        %s877 = smul.addr %s876, 4
        %s878 = scalar_lea.vmem %s7, %s877
        %p879 = scmp.lt.s32.totalorder %s42, 1
        %s880 = scalar_select %p879, %s42, 1
        %s881 = scalar_lea.vmem %s8, %s880
        %p882 = scmp.lt.s32.totalorder %s42, 1
        %s883 = scalar_select %p882, %s42, 1
        %s884 = smul.addr %s883, 4
        %s885 = smul.addr %s884, 4
        %s886 = scalar_lea.vmem %s9, %s885
        %p887 = scmp.lt.s32.totalorder %s42, 1
        %s888 = scalar_select %p887, %s42, 1
        %s889 = scalar_lea.vmem %s10, %s888
        %p890 = scmp.lt.s32.totalorder %s42, 1
        %s891 = scalar_select %p890, %s42, 1
        %s892 = scalar_lea.vmem %s11, %s891
        %p893 = scmp.lt.s32.totalorder %s42, 1
        %s894 = scalar_select %p893, %s42, 1
        %s895 = scalar_lea.vmem %s12, %s894
        %p896 = scmp.lt.s32.totalorder %s42, 1
        %s897 = scalar_select %p896, %s42, 1
        %s898 = smul.addr %s897, 4
        %s899 = smul.addr %s898, 4
        %s900 = scalar_lea.vmem %s13, %s899
        %p901 = scmp.lt.s32.totalorder %s42, 1
        %s902 = scalar_select %p901, %s42, 1
        %s903 = scalar_lea.vmem %s14, %s902
        %p904 = scmp.lt.s32.totalorder %s42, 1
        %s905 = scalar_select %p904, %s42, 1
        %s906 = smul.addr %s905, 16
        %s907 = smul.addr %s906, 4
        %s908 = scalar_lea.vmem %s15, %s907
        %p909 = scmp.lt.s32.totalorder %s42, 1
        %s910 = scalar_select %p909, %s42, 1
        %s911 = scalar_lea.vmem %s16, %s910
        %p913 = scmp.eq.s32.totalorder %s42, 0
        // Predicated region
        $region113: #{vint_forward.1} parent=111 // pred_check
          %p914 = pneg %p913
        $region114: #{vint_forward.1} parent=111 // pred_check_branch
          %916 = sbr.rel (%p914) target = $region116
        $region115: #{vint_forward.1} parent=111 // pred_region
          %v917 = vld [vmem:[%s867] sm:$0xff]
          %v919 = vcombine.high %v917, %v917
          %v921 = vpack.c.bf16 %v917, %v917
          %v922 = vpack.c.bf16 %v919, %v919
          %v923 = vld [vmem:[%s1] sm:$0xf]
          %v924 = vld [vmem:[%s1 + $0x4] sm:$0xf]
          %v925 = vld [vmem:[%s1 + $0x8] sm:$0xf]
          %v926 = vld [vmem:[%s1 + $0xc] sm:$0xf]
          %v927 = vld [vmem:[%s1 + $0x10] sm:$0xf]
          %v928 = vld [vmem:[%s1 + $0x14] sm:$0xf]
          %v929 = vld [vmem:[%s1 + $0x18] sm:$0xf]
          %v930 = vld [vmem:[%s1 + $0x1c] sm:$0xf]
          %v931 = vld [vmem:[%s1 + $0x20] sm:$0xf]
          %v932 = vld [vmem:[%s1 + $0x24] sm:$0xf]
          %v933 = vld [vmem:[%s1 + $0x28] sm:$0xf]
          %v934 = vld [vmem:[%s1 + $0x2c] sm:$0xf]
          %v935 = vld [vmem:[%s1 + $0x30] sm:$0xf]
          %v936 = vld [vmem:[%s1 + $0x34] sm:$0xf]
          %v937 = vld [vmem:[%s1 + $0x38] sm:$0xf]
          %v938 = vld [vmem:[%s1 + $0x3c] sm:$0xf]
          %v939 = vld [vmem:[%s1 + $0x40] sm:$0xf]
          %v940 = vld [vmem:[%s1 + $0x44] sm:$0xf]
          %v941 = vld [vmem:[%s1 + $0x48] sm:$0xf]
          %v942 = vld [vmem:[%s1 + $0x4c] sm:$0xf]
          %v943 = vld [vmem:[%s1 + $0x50] sm:$0xf]
          %v944 = vld [vmem:[%s1 + $0x54] sm:$0xf]
          %v945 = vld [vmem:[%s1 + $0x58] sm:$0xf]
          %v946 = vld [vmem:[%s1 + $0x5c] sm:$0xf]
          %v947 = vld [vmem:[%s2] sm:$0x1]
          %v949 = vlaneseq
          %v950 = vshrl.u32 %v949, 7
          %v951 = vsub.s32 0, %v950
          %v952 = vrot.slane %v947, %v951
          %v978 = vunpack.c.l.b16 %v923
          %v979 = vunpack.c.l.b16 %v924
          %v980 = vunpack.c.l.b16 %v925
          %v981 = vunpack.c.l.b16 %v926
          %v982 = vunpack.c.l.b16 %v927
          %v983 = vunpack.c.l.b16 %v928
          %v984 = vunpack.c.l.b16 %v929
          %v985 = vunpack.c.l.b16 %v930
          %v986 = vunpack.c.l.b16 %v931
          %v987 = vunpack.c.l.b16 %v932
          %v988 = vunpack.c.l.b16 %v933
          %v989 = vunpack.c.l.b16 %v934
          %v990 = vunpack.c.l.b16 %v935
          %v991 = vunpack.c.l.b16 %v936
          %v992 = vunpack.c.l.b16 %v937
          %v993 = vunpack.c.l.b16 %v938
          %v994 = vunpack.c.l.b16 %v939
          %v995 = vunpack.c.l.b16 %v940
          %v996 = vunpack.c.l.b16 %v941
          %v997 = vunpack.c.l.b16 %v942
          %v998 = vunpack.c.l.b16 %v943
          %v999 = vunpack.c.l.b16 %v944
          %v1000 = vunpack.c.l.b16 %v945
          %v1001 = vunpack.c.l.b16 %v946
          %v1002 = vpack.c.b16 %v979, %v978
          %v1003 = vpack.c.b16 %v981, %v980
          %v1004 = vpack.c.b16 %v983, %v982
          %v1005 = vpack.c.b16 %v985, %v984
          %v1006 = vpack.c.b16 %v987, %v986
          %v1007 = vpack.c.b16 %v989, %v988
          %v1008 = vpack.c.b16 %v991, %v990
          %v1009 = vpack.c.b16 %v993, %v992
          %v1010 = vpack.c.b16 %v995, %v994
          %v1011 = vpack.c.b16 %v997, %v996
          %v1012 = vpack.c.b16 %v999, %v998
          %v1013 = vpack.c.b16 %v1001, %v1000
          %vm1026 = vcmask 523264
          %v1028 = vsel %vm1026, %v922, 0
          %1030 = vmatprep.subr.bf16.mxu0 0
          %1031 = vmatpush1.bf16.msra.mxu0 %v1002
          %1032 = vmatprep.subr.bf16.mxu0 0
          %1033 = vmatpush1.bf16.msra.mxu0 %v1003
          %1034 = vmatprep.subr.bf16.mxu0 0
          %1035 = vmatpush1.bf16.msra.mxu0 %v1004
          %1036 = vmatprep.subr.bf16.mxu0 0
          %1037 = vmatpush1.bf16.msra.mxu0 %v1005
          %1038 = vmatprep.subr.bf16.mxu0 0
          %1039 = vmatpush1.bf16.msra.mxu0 %v1006
          %1040 = vmatprep.subr.bf16.mxu0 0
          %1041 = vmatpush1.bf16.msra.mxu0 %v1007
          %1042 = vmatprep.subr.bf16.mxu0 0
          %1043 = vmatpush1.bf16.msra.mxu0 %v1008
          %1044 = vmatprep.subr.bf16.mxu0 0
          %1045 = vmatpush1.bf16.msra.mxu0 %v1009
          %1046 = vmatprep.subr.bf16.mxu0 0
          %1047 = vmatpush1.bf16.msra.mxu0 %v1010
          %1048 = vmatprep.subr.bf16.mxu0 0
          %1049 = vmatpush1.bf16.msra.mxu0 %v1011
          %1050 = vmatprep.subr.bf16.mxu0 0
          %1051 = vmatpush1.bf16.msra.mxu0 %v1012
          %1052 = vmatprep.subr.bf16.mxu0 0
          %1053 = vmatpush1.bf16.msra.mxu0 %v1013
          %1054 = vmatprep.subr.bf16.mxu0 0
          %1055 = vmatpush1.bf16.msra.mxu0 0
          %1056 = vmatprep.subr.bf16.mxu0 0
          %1057 = vmatpush1.bf16.msra.mxu0 0
          %1058 = vmatprep.subr.bf16.mxu0 0
          %1059 = vmatpush1.bf16.msra.mxu0 0
          %1060 = vmatprep.subr.bf16.mxu0 0
          %1061 = vmatpush1.bf16.msra.mxu0 0
          %1062 = vmatprep.mubr.bf16.mxu0 %v1028
          %1063 = vmatmul.mubr.bf16.gmra.mrb[0].mxu0 %v921
          %v1064 = vpop.f32.mrb[0].mxu0
          %v1065 = vadd.f32 %v952, %v1064
          %v1066 = vpop.f32.mrb[0].mxu0
          %v1067 = vpop.f32.mrb[0].mxu0
          %v1068 = vpop.f32.mrb[0].mxu0
          %1069 = vdwg.mxu0
          %v1070 = vld [vmem:[%s3] sm:$0x3]
          %v1071 = vld [vmem:[%s4] sm:$0x3]
          %v1072 = vadd.f32 %v1070, %v1071
          %v1073 = vld [vmem:[%s4 + $0x2] sm:$0xf]
          %vm1074 = vcmask 254976
          %1075 = vst.msk [vmem:[#allocation2] sm:$0x3] %vm1074, %v1072
          %v1076 = vadd.f32 %v1065, %v1073
          %vm1077 = vcmask 257024
          %1078 = vst.msk [vmem:[#allocation2 + $0x2] sm:$0xf] %vm1077, %v1076
        $region116: #{vint_forward.1} parent=111 // pred_fallthru
          _
        %v1079 = vld [vmem:[#allocation2] sm:$0x3f]
        %v1080 = vld [vmem:[%s870] sm:$0x1]
        %v1081 = vld [vmem:[%s873] sm:$0x1]
        %vm1082 = vcmask 259072
        %v1083 = vsel %vm1082, %v1079, 0.0
        %1084 = vadd.xlane.f32.xlu0 %v1083
        %v1085 = vpop.xlane.xlu0 %1084
        %v1086 = vrcp.pop 32.0
        %v1087 = vmul.f32 %v1085, %v1086
        %v1088 = vsub.f32 %v1079, %v1087
        %v1089 = vmul.f32 %v1088, %v1088
        %v1090 = vsel %vm1082, %v1089, 0.0
        %1091 = vadd.xlane.f32.xlu0 %v1090
        %v1092 = vpop.xlane.xlu0 %1091
        %v1093 = vmul.f32 %v1092, %v1086
        %v1094 = vadd.f32 %v1093, 1e-06
        %v1095 = vrsqrt.pop %v1094
        %v1096 = vmul.f32 %v1088, %v1095
        %v1098 = vlaneseq
        %v1099 = vshrl.u32 %v1098, 7
        %v1100 = vsub.s32 0, %v1099
        %v1101 = vrot.slane %v1080, %v1100
        %v1103 = vmul.f32 %v1096, %v1101
        %v1105 = vlaneseq
        %v1106 = vshrl.u32 %v1105, 7
        %v1107 = vsub.s32 0, %v1106
        %v1108 = vrot.slane %v1081, %v1107
        %v1110 = vadd.f32 %v1103, %v1108
        %v1111 = vpack.c.bf16 %v1110, %v1110
        %v1112 = vld [vmem:[%s878] sm:$0xf]
        %v1113 = vld [vmem:[%s878 + $0x4] sm:$0xf]
        %v1114 = vld [vmem:[%s878 + $0x8] sm:$0xf]
        %v1115 = vld [vmem:[%s878 + $0xc] sm:$0xf]
        %v1116 = vld [vmem:[%s881] sm:$0x1]
        %v1118 = vlaneseq
        %v1119 = vshrl.u32 %v1118, 7
        %v1120 = vsub.s32 0, %v1119
        %v1121 = vrot.slane %v1116, %v1120
        %v1127 = vunpack.c.l.b16 %v1112
        %v1128 = vunpack.c.l.b16 %v1113
        %v1129 = vunpack.c.l.b16 %v1114
        %v1130 = vunpack.c.l.b16 %v1115
        %v1131 = vpack.c.b16 %v1128, %v1127
        %v1132 = vpack.c.b16 %v1130, %v1129
        %vm1135 = vcmask 261120
        %v1137 = vsel %vm1135, %v1111, 0
        %1139 = vmatprep.subr.bf16.mxu0 0
        %1140 = vmatpush1.bf16.msra.mxu0 %v1131
        %1141 = vmatprep.subr.bf16.mxu0 0
        %1142 = vmatpush1.bf16.msra.mxu0 %v1132
        %1143 = vmatprep.subr.bf16.mxu0 0
        %1144 = vmatpush1.bf16.msra.mxu0 0
        %1145 = vmatprep.subr.bf16.mxu0 0
        %1146 = vmatpush1.bf16.msra.mxu0 0
        %1147 = vmatprep.subr.bf16.mxu0 0
        %1148 = vmatpush1.bf16.msra.mxu0 0
        %1149 = vmatprep.subr.bf16.mxu0 0
        %1150 = vmatpush1.bf16.msra.mxu0 0
        %1151 = vmatprep.subr.bf16.mxu0 0
        %1152 = vmatpush1.bf16.msra.mxu0 0
        %1153 = vmatprep.subr.bf16.mxu0 0
        %1154 = vmatpush1.bf16.msra.mxu0 0
        %1155 = vmatprep.subr.bf16.mxu0 0
        %1156 = vmatpush1.bf16.msra.mxu0 0
        %1157 = vmatprep.subr.bf16.mxu0 0
        %1158 = vmatpush1.bf16.msra.mxu0 0
        %1159 = vmatprep.subr.bf16.mxu0 0
        %1160 = vmatpush1.bf16.msra.mxu0 0
        %1161 = vmatprep.subr.bf16.mxu0 0
        %1162 = vmatpush1.bf16.msra.mxu0 0
        %1163 = vmatprep.subr.bf16.mxu0 0
        %1164 = vmatpush1.bf16.msra.mxu0 0
        %1165 = vmatprep.subr.bf16.mxu0 0
        %1166 = vmatpush1.bf16.msra.mxu0 0
        %1167 = vmatprep.subr.bf16.mxu0 0
        %1168 = vmatpush1.bf16.msra.mxu0 0
        %1169 = vmatprep.subr.bf16.mxu0 0
        %1170 = vmatpush1.bf16.msra.mxu0 0
        %1171 = vmatprep.mubr.bf16.mxu0 0
        %1172 = vmatmul.mubr.bf16.gmra.mrb[0].mxu0 %v1137
        %v1173 = vpop.f32.mrb[0].mxu0
        %v1174 = vadd.f32 %v1121, %v1173
        %v1175 = vpop.f32.mrb[0].mxu0
        %v1176 = vpop.f32.mrb[0].mxu0
        %v1177 = vpop.f32.mrb[0].mxu0
        %1178 = vdwg.mxu0
        %v1179 = vpack.c.bf16 %v1174, %v1174
        %1181 = vrot.lane.b32.xlu0 %v1179, 96
        %v1182 = vpop.permute.xlu0 %1181
        %vm1183 = vcmask 64512
        %v1185 = vsel %vm1183, %v1179, 0
        %v1188 = vsel %vm1183, %v1182, 0
        %1190 = vmatprep.subr.bf16.mxu0 0
        %1191 = vmatpush1.bf16.xpose.msra.mxu0 %v1188
        %1192 = vmatprep.subr.bf16.mxu0 0
        %1193 = vmatpush1.bf16.xpose.msra.mxu0 0
        %1194 = vmatprep.subr.bf16.mxu0 0
        %1195 = vmatpush1.bf16.xpose.msra.mxu0 0
        %1196 = vmatprep.subr.bf16.mxu0 0
        %1197 = vmatpush1.bf16.xpose.msra.mxu0 0
        %1198 = vmatprep.subr.bf16.mxu0 0
        %1199 = vmatpush1.bf16.xpose.msra.mxu0 0
        %1200 = vmatprep.subr.bf16.mxu0 0
        %1201 = vmatpush1.bf16.xpose.msra.mxu0 0
        %1202 = vmatprep.subr.bf16.mxu0 0
        %1203 = vmatpush1.bf16.xpose.msra.mxu0 0
        %1204 = vmatprep.subr.bf16.mxu0 0
        %1205 = vmatpush1.bf16.xpose.msra.mxu0 0
        %1206 = vmatprep.subr.bf16.mxu0 0
        %1207 = vmatpush1.bf16.xpose.msra.mxu0 0
        %1208 = vmatprep.subr.bf16.mxu0 0
        %1209 = vmatpush1.bf16.xpose.msra.mxu0 0
        %1210 = vmatprep.subr.bf16.mxu0 0
        %1211 = vmatpush1.bf16.xpose.msra.mxu0 0
        %1212 = vmatprep.subr.bf16.mxu0 0
        %1213 = vmatpush1.bf16.xpose.msra.mxu0 0
        %1214 = vmatprep.subr.bf16.mxu0 0
        %1215 = vmatpush1.bf16.xpose.msra.mxu0 0
        %1216 = vmatprep.subr.bf16.mxu0 0
        %1217 = vmatpush1.bf16.xpose.msra.mxu0 0
        %1218 = vmatprep.subr.bf16.mxu0 0
        %1219 = vmatpush1.bf16.xpose.msra.mxu0 0
        %1220 = vmatprep.subr.bf16.mxu0 0
        %1221 = vmatpush1.bf16.xpose.msra.mxu0 0
        %1222 = vmatprep.mubr.bf16.mxu0 0
        %1223 = vmatmul.mubr.bf16.gmra.mrb[0].mxu0 %v1185
        %v1224 = vpop.f32.mrb[0].mxu0
        %v1225 = vadd.f32 0.0, %v1224
        %v1226 = vpop.f32.mrb[0].mxu0
        %v1227 = vpop.f32.mrb[0].mxu0
        %v1228 = vpop.f32.mrb[0].mxu0
        %1229 = vdwg.mxu0
        %vm1230 = vcmask 46080
        %v1231 = vsel %vm1230, %v1225, -inf
        %1232 = vmax.xlane.f32.xlu0 %v1231
        %v1233 = vpop.xlane.xlu0 %1232
        %v1234 = vsub.f32 %v1225, %v1233
        %v1235 = vmul.f32 %v1234, 1.442695
        %v1236 = vpow.pop %v1235
        %v1237 = vsel %vm1230, %v1236, 0.0
        %1238 = vadd.xlane.f32.xlu0 %v1237
        %v1239 = vpop.xlane.xlu0 %1238
        %v1240 = vrcp.pop %v1239
        %v1241 = vmul.f32 %v1236, %v1240
        %v1242 = vpack.c.bf16 %v1241, %v1241
        %1243 = vrot.lane.b32.xlu0 %v1179, 64
        %v1244 = vpop.permute.xlu0 %1243
        %vm1245 = vcmask 48128
        %v1247 = vsel %vm1245, %v1242, 0
        %vm1249 = vcmask 1042432
        %v1251 = vsel %vm1249, %v1244, 0
        %1253 = vmatprep.subr.bf16.mxu0 0
        %1254 = vmatpush1.bf16.msra.mxu0 %v1251
        %1255 = vmatprep.subr.bf16.mxu0 0
        %1256 = vmatpush1.bf16.msra.mxu0 0
        %1257 = vmatprep.subr.bf16.mxu0 0
        %1258 = vmatpush1.bf16.msra.mxu0 0
        %1259 = vmatprep.subr.bf16.mxu0 0
        %1260 = vmatpush1.bf16.msra.mxu0 0
        %1261 = vmatprep.subr.bf16.mxu0 0
        %1262 = vmatpush1.bf16.msra.mxu0 0
        %1263 = vmatprep.subr.bf16.mxu0 0
        %1264 = vmatpush1.bf16.msra.mxu0 0
        %1265 = vmatprep.subr.bf16.mxu0 0
        %1266 = vmatpush1.bf16.msra.mxu0 0
        %1267 = vmatprep.subr.bf16.mxu0 0
        %1268 = vmatpush1.bf16.msra.mxu0 0
        %1269 = vmatprep.subr.bf16.mxu0 0
        %1270 = vmatpush1.bf16.msra.mxu0 0
        %1271 = vmatprep.subr.bf16.mxu0 0
        %1272 = vmatpush1.bf16.msra.mxu0 0
        %1273 = vmatprep.subr.bf16.mxu0 0
        %1274 = vmatpush1.bf16.msra.mxu0 0
        %1275 = vmatprep.subr.bf16.mxu0 0
        %1276 = vmatpush1.bf16.msra.mxu0 0
        %1277 = vmatprep.subr.bf16.mxu0 0
        %1278 = vmatpush1.bf16.msra.mxu0 0
        %1279 = vmatprep.subr.bf16.mxu0 0
        %1280 = vmatpush1.bf16.msra.mxu0 0
        %1281 = vmatprep.subr.bf16.mxu0 0
        %1282 = vmatpush1.bf16.msra.mxu0 0
        %1283 = vmatprep.subr.bf16.mxu0 0
        %1284 = vmatpush1.bf16.msra.mxu0 0
        %1285 = vmatprep.mubr.bf16.mxu0 0
        %1286 = vmatmul.mubr.bf16.gmra.mrb[0].mxu0 %v1247
        %v1287 = vpop.f32.mrb[0].mxu0
        %v1288 = vadd.f32 0.0, %v1287
        %v1289 = vpop.f32.mrb[0].mxu0
        %v1290 = vpop.f32.mrb[0].mxu0
        %v1291 = vpop.f32.mrb[0].mxu0
        %1292 = vdwg.mxu0
        %v1293 = vpack.c.bf16 %v1288, %v1288
        %vm1294 = vcmask 59392
        %1295 = vst.msk [vmem:[#allocation3] sm:$0x7] %vm1294, %v1293
        %1296 = vrot.lane.b32.xlu0 %v1179, 120
        %v1297 = vpop.permute.xlu0 %1296
        %1298 = vrot.lane.b32.xlu0 %v1179, 88
        %v1299 = vpop.permute.xlu0 %1298
        %v1301 = vsel %vm1183, %v1297, 0
        %v1304 = vsel %vm1183, %v1299, 0
        %1306 = vmatprep.subr.bf16.mxu0 0
        %1307 = vmatpush1.bf16.xpose.msra.mxu0 %v1304
        %1308 = vmatprep.subr.bf16.mxu0 0
        %1309 = vmatpush1.bf16.xpose.msra.mxu0 0
        %1310 = vmatprep.subr.bf16.mxu0 0
        %1311 = vmatpush1.bf16.xpose.msra.mxu0 0
        %1312 = vmatprep.subr.bf16.mxu0 0
        %1313 = vmatpush1.bf16.xpose.msra.mxu0 0
        %1314 = vmatprep.subr.bf16.mxu0 0
        %1315 = vmatpush1.bf16.xpose.msra.mxu0 0
        %1316 = vmatprep.subr.bf16.mxu0 0
        %1317 = vmatpush1.bf16.xpose.msra.mxu0 0
        %1318 = vmatprep.subr.bf16.mxu0 0
        %1319 = vmatpush1.bf16.xpose.msra.mxu0 0
        %1320 = vmatprep.subr.bf16.mxu0 0
        %1321 = vmatpush1.bf16.xpose.msra.mxu0 0
        %1322 = vmatprep.subr.bf16.mxu0 0
        %1323 = vmatpush1.bf16.xpose.msra.mxu0 0
        %1324 = vmatprep.subr.bf16.mxu0 0
        %1325 = vmatpush1.bf16.xpose.msra.mxu0 0
        %1326 = vmatprep.subr.bf16.mxu0 0
        %1327 = vmatpush1.bf16.xpose.msra.mxu0 0
        %1328 = vmatprep.subr.bf16.mxu0 0
        %1329 = vmatpush1.bf16.xpose.msra.mxu0 0
        %1330 = vmatprep.subr.bf16.mxu0 0
        %1331 = vmatpush1.bf16.xpose.msra.mxu0 0
        %1332 = vmatprep.subr.bf16.mxu0 0
        %1333 = vmatpush1.bf16.xpose.msra.mxu0 0
        %1334 = vmatprep.subr.bf16.mxu0 0
        %1335 = vmatpush1.bf16.xpose.msra.mxu0 0
        %1336 = vmatprep.subr.bf16.mxu0 0
        %1337 = vmatpush1.bf16.xpose.msra.mxu0 0
        %1338 = vmatprep.mubr.bf16.mxu0 0
        %1339 = vmatmul.mubr.bf16.gmra.mrb[0].mxu0 %v1301
        %v1340 = vpop.f32.mrb[0].mxu0
        %v1341 = vadd.f32 0.0, %v1340
        %v1342 = vpop.f32.mrb[0].mxu0
        %v1343 = vpop.f32.mrb[0].mxu0
        %v1344 = vpop.f32.mrb[0].mxu0
        %1345 = vdwg.mxu0
        %v1346 = vsel %vm1230, %v1341, -inf
        %1347 = vmax.xlane.f32.xlu0 %v1346
        %v1348 = vpop.xlane.xlu0 %1347
        %v1349 = vsub.f32 %v1341, %v1348
        %v1350 = vmul.f32 %v1349, 1.442695
        %v1351 = vpow.pop %v1350
        %v1352 = vsel %vm1230, %v1351, 0.0
        %1353 = vadd.xlane.f32.xlu0 %v1352
        %v1354 = vpop.xlane.xlu0 %1353
        %v1355 = vrcp.pop %v1354
        %v1356 = vmul.f32 %v1351, %v1355
        %v1357 = vpack.c.bf16 %v1356, %v1356
        %1358 = vrot.lane.b32.xlu0 %v1179, 56
        %v1359 = vpop.permute.xlu0 %1358
        %v1361 = vsel %vm1245, %v1357, 0
        %v1364 = vsel %vm1249, %v1359, 0
        %1366 = vmatprep.subr.bf16.mxu0 0
        %1367 = vmatpush1.bf16.msra.mxu0 %v1364
        %1368 = vmatprep.subr.bf16.mxu0 0
        %1369 = vmatpush1.bf16.msra.mxu0 0
        %1370 = vmatprep.subr.bf16.mxu0 0
        %1371 = vmatpush1.bf16.msra.mxu0 0
        %1372 = vmatprep.subr.bf16.mxu0 0
        %1373 = vmatpush1.bf16.msra.mxu0 0
        %1374 = vmatprep.subr.bf16.mxu0 0
        %1375 = vmatpush1.bf16.msra.mxu0 0
        %1376 = vmatprep.subr.bf16.mxu0 0
        %1377 = vmatpush1.bf16.msra.mxu0 0
        %1378 = vmatprep.subr.bf16.mxu0 0
        %1379 = vmatpush1.bf16.msra.mxu0 0
        %1380 = vmatprep.subr.bf16.mxu0 0
        %1381 = vmatpush1.bf16.msra.mxu0 0
        %1382 = vmatprep.subr.bf16.mxu0 0
        %1383 = vmatpush1.bf16.msra.mxu0 0
        %1384 = vmatprep.subr.bf16.mxu0 0
        %1385 = vmatpush1.bf16.msra.mxu0 0
        %1386 = vmatprep.subr.bf16.mxu0 0
        %1387 = vmatpush1.bf16.msra.mxu0 0
        %1388 = vmatprep.subr.bf16.mxu0 0
        %1389 = vmatpush1.bf16.msra.mxu0 0
        %1390 = vmatprep.subr.bf16.mxu0 0
        %1391 = vmatpush1.bf16.msra.mxu0 0
        %1392 = vmatprep.subr.bf16.mxu0 0
        %1393 = vmatpush1.bf16.msra.mxu0 0
        %1394 = vmatprep.subr.bf16.mxu0 0
        %1395 = vmatpush1.bf16.msra.mxu0 0
        %1396 = vmatprep.subr.bf16.mxu0 0
        %1397 = vmatpush1.bf16.msra.mxu0 0
        %1398 = vmatprep.mubr.bf16.mxu0 0
        %1399 = vmatmul.mubr.bf16.gmra.mrb[0].mxu0 %v1361
        %v1400 = vpop.f32.mrb[0].mxu0
        %v1401 = vadd.f32 0.0, %v1400
        %v1402 = vpop.f32.mrb[0].mxu0
        %v1403 = vpop.f32.mrb[0].mxu0
        %v1404 = vpop.f32.mrb[0].mxu0
        %1405 = vdwg.mxu0
        %v1406 = vpack.c.bf16 %v1401, %v1401
        %v1408 = vunpack.c.l.b16 %v1406
        %v1409 = vpack.c.b16 %v1408, %v1408
        %1410 = vrot.lane.b32.xlu0 %v1409, 8
        %v1411 = vpop.permute.xlu0 %1410
        %vm1413 = vcmask 124992
        %1414 = vst.msk [vmem:[#allocation3] sm:$0x7] %vm1413, %v1411
        %1415 = vrot.lane.b32.xlu0 %v1179, 112
        %v1416 = vpop.permute.xlu0 %1415
        %1417 = vrot.lane.b32.xlu0 %v1179, 80
        %v1418 = vpop.permute.xlu0 %1417
        %v1420 = vsel %vm1183, %v1416, 0
        %v1423 = vsel %vm1183, %v1418, 0
        %1425 = vmatprep.subr.bf16.mxu0 0
        %1426 = vmatpush1.bf16.xpose.msra.mxu0 %v1423
        %1427 = vmatprep.subr.bf16.mxu0 0
        %1428 = vmatpush1.bf16.xpose.msra.mxu0 0
        %1429 = vmatprep.subr.bf16.mxu0 0
        %1430 = vmatpush1.bf16.xpose.msra.mxu0 0
        %1431 = vmatprep.subr.bf16.mxu0 0
        %1432 = vmatpush1.bf16.xpose.msra.mxu0 0
        %1433 = vmatprep.subr.bf16.mxu0 0
        %1434 = vmatpush1.bf16.xpose.msra.mxu0 0
        %1435 = vmatprep.subr.bf16.mxu0 0
        %1436 = vmatpush1.bf16.xpose.msra.mxu0 0
        %1437 = vmatprep.subr.bf16.mxu0 0
        %1438 = vmatpush1.bf16.xpose.msra.mxu0 0
        %1439 = vmatprep.subr.bf16.mxu0 0
        %1440 = vmatpush1.bf16.xpose.msra.mxu0 0
        %1441 = vmatprep.subr.bf16.mxu0 0
        %1442 = vmatpush1.bf16.xpose.msra.mxu0 0
        %1443 = vmatprep.subr.bf16.mxu0 0
        %1444 = vmatpush1.bf16.xpose.msra.mxu0 0
        %1445 = vmatprep.subr.bf16.mxu0 0
        %1446 = vmatpush1.bf16.xpose.msra.mxu0 0
        %1447 = vmatprep.subr.bf16.mxu0 0
        %1448 = vmatpush1.bf16.xpose.msra.mxu0 0
        %1449 = vmatprep.subr.bf16.mxu0 0
        %1450 = vmatpush1.bf16.xpose.msra.mxu0 0
        %1451 = vmatprep.subr.bf16.mxu0 0
        %1452 = vmatpush1.bf16.xpose.msra.mxu0 0
        %1453 = vmatprep.subr.bf16.mxu0 0
        %1454 = vmatpush1.bf16.xpose.msra.mxu0 0
        %1455 = vmatprep.subr.bf16.mxu0 0
        %1456 = vmatpush1.bf16.xpose.msra.mxu0 0
        %1457 = vmatprep.mubr.bf16.mxu0 0
        %1458 = vmatmul.mubr.bf16.gmra.mrb[0].mxu0 %v1420
        %v1459 = vpop.f32.mrb[0].mxu0
        %v1460 = vadd.f32 0.0, %v1459
        %v1461 = vpop.f32.mrb[0].mxu0
        %v1462 = vpop.f32.mrb[0].mxu0
        %v1463 = vpop.f32.mrb[0].mxu0
        %1464 = vdwg.mxu0
        %v1465 = vsel %vm1230, %v1460, -inf
        %1466 = vmax.xlane.f32.xlu0 %v1465
        %v1467 = vpop.xlane.xlu0 %1466
        %v1468 = vsub.f32 %v1460, %v1467
        %v1469 = vmul.f32 %v1468, 1.442695
        %v1470 = vpow.pop %v1469
        %v1471 = vsel %vm1230, %v1470, 0.0
        %1472 = vadd.xlane.f32.xlu0 %v1471
        %v1473 = vpop.xlane.xlu0 %1472
        %v1474 = vrcp.pop %v1473
        %v1475 = vmul.f32 %v1470, %v1474
        %v1476 = vpack.c.bf16 %v1475, %v1475
        %1477 = vrot.lane.b32.xlu0 %v1179, 48
        %v1478 = vpop.permute.xlu0 %1477
        %v1480 = vsel %vm1245, %v1476, 0
        %v1483 = vsel %vm1249, %v1478, 0
        %1485 = vmatprep.subr.bf16.mxu0 0
        %1486 = vmatpush1.bf16.msra.mxu0 %v1483
        %1487 = vmatprep.subr.bf16.mxu0 0
        %1488 = vmatpush1.bf16.msra.mxu0 0
        %1489 = vmatprep.subr.bf16.mxu0 0
        %1490 = vmatpush1.bf16.msra.mxu0 0
        %1491 = vmatprep.subr.bf16.mxu0 0
        %1492 = vmatpush1.bf16.msra.mxu0 0
        %1493 = vmatprep.subr.bf16.mxu0 0
        %1494 = vmatpush1.bf16.msra.mxu0 0
        %1495 = vmatprep.subr.bf16.mxu0 0
        %1496 = vmatpush1.bf16.msra.mxu0 0
        %1497 = vmatprep.subr.bf16.mxu0 0
        %1498 = vmatpush1.bf16.msra.mxu0 0
        %1499 = vmatprep.subr.bf16.mxu0 0
        %1500 = vmatpush1.bf16.msra.mxu0 0
        %1501 = vmatprep.subr.bf16.mxu0 0
        %1502 = vmatpush1.bf16.msra.mxu0 0
        %1503 = vmatprep.subr.bf16.mxu0 0
        %1504 = vmatpush1.bf16.msra.mxu0 0
        %1505 = vmatprep.subr.bf16.mxu0 0
        %1506 = vmatpush1.bf16.msra.mxu0 0
        %1507 = vmatprep.subr.bf16.mxu0 0
        %1508 = vmatpush1.bf16.msra.mxu0 0
        %1509 = vmatprep.subr.bf16.mxu0 0
        %1510 = vmatpush1.bf16.msra.mxu0 0
        %1511 = vmatprep.subr.bf16.mxu0 0
        %1512 = vmatpush1.bf16.msra.mxu0 0
        %1513 = vmatprep.subr.bf16.mxu0 0
        %1514 = vmatpush1.bf16.msra.mxu0 0
        %1515 = vmatprep.subr.bf16.mxu0 0
        %1516 = vmatpush1.bf16.msra.mxu0 0
        %1517 = vmatprep.mubr.bf16.mxu0 0
        %1518 = vmatmul.mubr.bf16.gmra.mrb[0].mxu0 %v1480
        %v1519 = vpop.f32.mrb[0].mxu0
        %v1520 = vadd.f32 0.0, %v1519
        %v1521 = vpop.f32.mrb[0].mxu0
        %v1522 = vpop.f32.mrb[0].mxu0
        %v1523 = vpop.f32.mrb[0].mxu0
        %1524 = vdwg.mxu0
        %v1525 = vpack.c.bf16 %v1520, %v1520
        %v1527 = vunpack.c.l.b16 %v1525
        %v1528 = vpack.c.b16 %v1527, %v1527
        %1529 = vrot.lane.b32.xlu0 %v1528, 16
        %v1530 = vpop.permute.xlu0 %1529
        %vm1532 = vcmask 190592
        %1533 = vst.msk [vmem:[#allocation3] sm:$0x7] %vm1532, %v1530
        %1534 = vrot.lane.b32.xlu0 %v1179, 104
        %v1535 = vpop.permute.xlu0 %1534
        %1536 = vrot.lane.b32.xlu0 %v1179, 72
        %v1537 = vpop.permute.xlu0 %1536
        %v1539 = vsel %vm1183, %v1535, 0
        %v1542 = vsel %vm1183, %v1537, 0
        %1544 = vmatprep.subr.bf16.mxu0 0
        %1545 = vmatpush1.bf16.xpose.msra.mxu0 %v1542
        %1546 = vmatprep.subr.bf16.mxu0 0
        %1547 = vmatpush1.bf16.xpose.msra.mxu0 0
        %1548 = vmatprep.subr.bf16.mxu0 0
        %1549 = vmatpush1.bf16.xpose.msra.mxu0 0
        %1550 = vmatprep.subr.bf16.mxu0 0
        %1551 = vmatpush1.bf16.xpose.msra.mxu0 0
        %1552 = vmatprep.subr.bf16.mxu0 0
        %1553 = vmatpush1.bf16.xpose.msra.mxu0 0
        %1554 = vmatprep.subr.bf16.mxu0 0
        %1555 = vmatpush1.bf16.xpose.msra.mxu0 0
        %1556 = vmatprep.subr.bf16.mxu0 0
        %1557 = vmatpush1.bf16.xpose.msra.mxu0 0
        %1558 = vmatprep.subr.bf16.mxu0 0
        %1559 = vmatpush1.bf16.xpose.msra.mxu0 0
        %1560 = vmatprep.subr.bf16.mxu0 0
        %1561 = vmatpush1.bf16.xpose.msra.mxu0 0
        %1562 = vmatprep.subr.bf16.mxu0 0
        %1563 = vmatpush1.bf16.xpose.msra.mxu0 0
        %1564 = vmatprep.subr.bf16.mxu0 0
        %1565 = vmatpush1.bf16.xpose.msra.mxu0 0
        %1566 = vmatprep.subr.bf16.mxu0 0
        %1567 = vmatpush1.bf16.xpose.msra.mxu0 0
        %1568 = vmatprep.subr.bf16.mxu0 0
        %1569 = vmatpush1.bf16.xpose.msra.mxu0 0
        %1570 = vmatprep.subr.bf16.mxu0 0
        %1571 = vmatpush1.bf16.xpose.msra.mxu0 0
        %1572 = vmatprep.subr.bf16.mxu0 0
        %1573 = vmatpush1.bf16.xpose.msra.mxu0 0
        %1574 = vmatprep.subr.bf16.mxu0 0
        %1575 = vmatpush1.bf16.xpose.msra.mxu0 0
        %1576 = vmatprep.mubr.bf16.mxu0 0
        %1577 = vmatmul.mubr.bf16.gmra.mrb[0].mxu0 %v1539
        %v1578 = vpop.f32.mrb[0].mxu0
        %v1579 = vadd.f32 0.0, %v1578
        %v1580 = vpop.f32.mrb[0].mxu0
        %v1581 = vpop.f32.mrb[0].mxu0
        %v1582 = vpop.f32.mrb[0].mxu0
        %1583 = vdwg.mxu0
        %v1584 = vsel %vm1230, %v1579, -inf
        %1585 = vmax.xlane.f32.xlu0 %v1584
        %v1586 = vpop.xlane.xlu0 %1585
        %v1587 = vsub.f32 %v1579, %v1586
        %v1588 = vmul.f32 %v1587, 1.442695
        %v1589 = vpow.pop %v1588
        %v1590 = vsel %vm1230, %v1589, 0.0
        %1591 = vadd.xlane.f32.xlu0 %v1590
        %v1592 = vpop.xlane.xlu0 %1591
        %v1593 = vrcp.pop %v1592
        %v1594 = vmul.f32 %v1589, %v1593
        %v1595 = vpack.c.bf16 %v1594, %v1594
        %1596 = vrot.lane.b32.xlu0 %v1179, 40
        %v1597 = vpop.permute.xlu0 %1596
        %v1599 = vsel %vm1245, %v1595, 0
        %v1602 = vsel %vm1249, %v1597, 0
        %1604 = vmatprep.subr.bf16.mxu0 0
        %1605 = vmatpush1.bf16.msra.mxu0 %v1602
        %1606 = vmatprep.subr.bf16.mxu0 0
        %1607 = vmatpush1.bf16.msra.mxu0 0
        %1608 = vmatprep.subr.bf16.mxu0 0
        %1609 = vmatpush1.bf16.msra.mxu0 0
        %1610 = vmatprep.subr.bf16.mxu0 0
        %1611 = vmatpush1.bf16.msra.mxu0 0
        %1612 = vmatprep.subr.bf16.mxu0 0
        %1613 = vmatpush1.bf16.msra.mxu0 0
        %1614 = vmatprep.subr.bf16.mxu0 0
        %1615 = vmatpush1.bf16.msra.mxu0 0
        %1616 = vmatprep.subr.bf16.mxu0 0
        %1617 = vmatpush1.bf16.msra.mxu0 0
        %1618 = vmatprep.subr.bf16.mxu0 0
        %1619 = vmatpush1.bf16.msra.mxu0 0
        %1620 = vmatprep.subr.bf16.mxu0 0
        %1621 = vmatpush1.bf16.msra.mxu0 0
        %1622 = vmatprep.subr.bf16.mxu0 0
        %1623 = vmatpush1.bf16.msra.mxu0 0
        %1624 = vmatprep.subr.bf16.mxu0 0
        %1625 = vmatpush1.bf16.msra.mxu0 0
        %1626 = vmatprep.subr.bf16.mxu0 0
        %1627 = vmatpush1.bf16.msra.mxu0 0
        %1628 = vmatprep.subr.bf16.mxu0 0
        %1629 = vmatpush1.bf16.msra.mxu0 0
        %1630 = vmatprep.subr.bf16.mxu0 0
        %1631 = vmatpush1.bf16.msra.mxu0 0
        %1632 = vmatprep.subr.bf16.mxu0 0
        %1633 = vmatpush1.bf16.msra.mxu0 0
        %1634 = vmatprep.subr.bf16.mxu0 0
        %1635 = vmatpush1.bf16.msra.mxu0 0
        %1636 = vmatprep.mubr.bf16.mxu0 0
        %1637 = vmatmul.mubr.bf16.gmra.mrb[0].mxu0 %v1599
        %v1638 = vpop.f32.mrb[0].mxu0
        %v1639 = vadd.f32 0.0, %v1638
        %v1640 = vpop.f32.mrb[0].mxu0
        %v1641 = vpop.f32.mrb[0].mxu0
        %v1642 = vpop.f32.mrb[0].mxu0
        %1643 = vdwg.mxu0
        %v1644 = vpack.c.bf16 %v1639, %v1639
        %v1646 = vunpack.c.l.b16 %v1644
        %v1647 = vpack.c.b16 %v1646, %v1646
        %1648 = vrot.lane.b32.xlu0 %v1647, 24
        %v1649 = vpop.permute.xlu0 %1648
        %vm1651 = vcmask 256192
        %1652 = vst.msk [vmem:[#allocation3] sm:$0x7] %vm1651, %v1649
        %v1653 = vld [vmem:[#allocation3] sm:$0x7]
        %v1654 = vld [vmem:[%s886] sm:$0xf]
        %v1655 = vld [vmem:[%s886 + $0x4] sm:$0xf]
        %v1656 = vld [vmem:[%s886 + $0x8] sm:$0xf]
        %v1657 = vld [vmem:[%s886 + $0xc] sm:$0xf]
        %v1658 = vld [vmem:[%s889] sm:$0x1]
        %v1660 = vlaneseq
        %v1661 = vshrl.u32 %v1660, 7
        %v1662 = vsub.s32 0, %v1661
        %v1663 = vrot.slane %v1658, %v1662
        %v1669 = vunpack.c.l.b16 %v1654
        %v1670 = vunpack.c.l.b16 %v1655
        %v1671 = vunpack.c.l.b16 %v1656
        %v1672 = vunpack.c.l.b16 %v1657
        %v1673 = vpack.c.b16 %v1670, %v1669
        %v1674 = vpack.c.b16 %v1672, %v1671
        %v1678 = vsel %vm1135, %v1653, 0
        %1680 = vmatprep.subr.bf16.mxu0 0
        %1681 = vmatpush1.bf16.msra.mxu0 %v1673
        %1682 = vmatprep.subr.bf16.mxu0 0
        %1683 = vmatpush1.bf16.msra.mxu0 %v1674
        %1684 = vmatprep.subr.bf16.mxu0 0
        %1685 = vmatpush1.bf16.msra.mxu0 0
        %1686 = vmatprep.subr.bf16.mxu0 0
        %1687 = vmatpush1.bf16.msra.mxu0 0
        %1688 = vmatprep.subr.bf16.mxu0 0
        %1689 = vmatpush1.bf16.msra.mxu0 0
        %1690 = vmatprep.subr.bf16.mxu0 0
        %1691 = vmatpush1.bf16.msra.mxu0 0
        %1692 = vmatprep.subr.bf16.mxu0 0
        %1693 = vmatpush1.bf16.msra.mxu0 0
        %1694 = vmatprep.subr.bf16.mxu0 0
        %1695 = vmatpush1.bf16.msra.mxu0 0
        %1696 = vmatprep.subr.bf16.mxu0 0
        %1697 = vmatpush1.bf16.msra.mxu0 0
        %1698 = vmatprep.subr.bf16.mxu0 0
        %1699 = vmatpush1.bf16.msra.mxu0 0
        %1700 = vmatprep.subr.bf16.mxu0 0
        %1701 = vmatpush1.bf16.msra.mxu0 0
        %1702 = vmatprep.subr.bf16.mxu0 0
        %1703 = vmatpush1.bf16.msra.mxu0 0
        %1704 = vmatprep.subr.bf16.mxu0 0
        %1705 = vmatpush1.bf16.msra.mxu0 0
        %1706 = vmatprep.subr.bf16.mxu0 0
        %1707 = vmatpush1.bf16.msra.mxu0 0
        %1708 = vmatprep.subr.bf16.mxu0 0
        %1709 = vmatpush1.bf16.msra.mxu0 0
        %1710 = vmatprep.subr.bf16.mxu0 0
        %1711 = vmatpush1.bf16.msra.mxu0 0
        %1712 = vmatprep.mubr.bf16.mxu0 0
        %1713 = vmatmul.mubr.bf16.gmra.mrb[0].mxu0 %v1678
        %v1714 = vpop.f32.mrb[0].mxu0
        %v1715 = vadd.f32 %v1663, %v1714
        %v1716 = vpop.f32.mrb[0].mxu0
        %v1717 = vpop.f32.mrb[0].mxu0
        %v1718 = vpop.f32.mrb[0].mxu0
        %1719 = vdwg.mxu0
        %v1720 = vadd.f32 %v1079, %v1715
        %v1721 = vld [vmem:[%s892] sm:$0x1]
        %v1722 = vld [vmem:[%s895] sm:$0x1]
        %v1723 = vsel %vm1082, %v1720, 0.0
        %1724 = vadd.xlane.f32.xlu0 %v1723
        %v1725 = vpop.xlane.xlu0 %1724
        %v1726 = vmul.f32 %v1725, %v1086
        %v1727 = vsub.f32 %v1720, %v1726
        %v1728 = vmul.f32 %v1727, %v1727
        %v1729 = vsel %vm1082, %v1728, 0.0
        %1730 = vadd.xlane.f32.xlu0 %v1729
        %v1731 = vpop.xlane.xlu0 %1730
        %v1732 = vmul.f32 %v1731, %v1086
        %v1733 = vadd.f32 %v1732, 1e-06
        %v1734 = vrsqrt.pop %v1733
        %v1735 = vmul.f32 %v1727, %v1734
        %v1737 = vlaneseq
        %v1738 = vshrl.u32 %v1737, 7
        %v1739 = vsub.s32 0, %v1738
        %v1740 = vrot.slane %v1721, %v1739
        %v1742 = vmul.f32 %v1735, %v1740
        %v1744 = vlaneseq
        %v1745 = vshrl.u32 %v1744, 7
        %v1746 = vsub.s32 0, %v1745
        %v1747 = vrot.slane %v1722, %v1746
        %v1749 = vadd.f32 %v1742, %v1747
        %v1750 = vpack.c.bf16 %v1749, %v1749
        %v1751 = vld [vmem:[%s900] sm:$0xf]
        %v1752 = vld [vmem:[%s900 + $0x4] sm:$0xf]
        %v1753 = vld [vmem:[%s900 + $0x8] sm:$0xf]
        %v1754 = vld [vmem:[%s900 + $0xc] sm:$0xf]
        %v1755 = vld [vmem:[%s903] sm:$0x1]
        %v1757 = vlaneseq
        %v1758 = vshrl.u32 %v1757, 7
        %v1759 = vsub.s32 0, %v1758
        %v1760 = vrot.slane %v1755, %v1759
        %v1766 = vunpack.c.l.b16 %v1751
        %v1767 = vunpack.c.l.b16 %v1752
        %v1768 = vunpack.c.l.b16 %v1753
        %v1769 = vunpack.c.l.b16 %v1754
        %v1770 = vpack.c.b16 %v1767, %v1766
        %v1771 = vpack.c.b16 %v1769, %v1768
        %v1775 = vsel %vm1135, %v1750, 0
        %1777 = vmatprep.subr.bf16.mxu0 0
        %1778 = vmatpush1.bf16.msra.mxu0 %v1770
        %1779 = vmatprep.subr.bf16.mxu0 0
        %1780 = vmatpush1.bf16.msra.mxu0 %v1771
        %1781 = vmatprep.subr.bf16.mxu0 0
        %1782 = vmatpush1.bf16.msra.mxu0 0
        %1783 = vmatprep.subr.bf16.mxu0 0
        %1784 = vmatpush1.bf16.msra.mxu0 0
        %1785 = vmatprep.subr.bf16.mxu0 0
        %1786 = vmatpush1.bf16.msra.mxu0 0
        %1787 = vmatprep.subr.bf16.mxu0 0
        %1788 = vmatpush1.bf16.msra.mxu0 0
        %1789 = vmatprep.subr.bf16.mxu0 0
        %1790 = vmatpush1.bf16.msra.mxu0 0
        %1791 = vmatprep.subr.bf16.mxu0 0
        %1792 = vmatpush1.bf16.msra.mxu0 0
        %1793 = vmatprep.subr.bf16.mxu0 0
        %1794 = vmatpush1.bf16.msra.mxu0 0
        %1795 = vmatprep.subr.bf16.mxu0 0
        %1796 = vmatpush1.bf16.msra.mxu0 0
        %1797 = vmatprep.subr.bf16.mxu0 0
        %1798 = vmatpush1.bf16.msra.mxu0 0
        %1799 = vmatprep.subr.bf16.mxu0 0
        %1800 = vmatpush1.bf16.msra.mxu0 0
        %1801 = vmatprep.subr.bf16.mxu0 0
        %1802 = vmatpush1.bf16.msra.mxu0 0
        %1803 = vmatprep.subr.bf16.mxu0 0
        %1804 = vmatpush1.bf16.msra.mxu0 0
        %1805 = vmatprep.subr.bf16.mxu0 0
        %1806 = vmatpush1.bf16.msra.mxu0 0
        %1807 = vmatprep.subr.bf16.mxu0 0
        %1808 = vmatpush1.bf16.msra.mxu0 0
        %1809 = vmatprep.mubr.bf16.mxu0 0
        %1810 = vmatmul.mubr.bf16.gmra.mrb[0].mxu0 %v1775
        %v1811 = vpop.f32.mrb[0].mxu0
        %v1812 = vadd.f32 %v1760, %v1811
        %v1813 = vpop.f32.mrb[0].mxu0
        %v1814 = vpop.f32.mrb[0].mxu0
        %v1815 = vpop.f32.mrb[0].mxu0
        %1816 = vdwg.mxu0
        %v1817 = vmul.f32 %v1812, 0.5
        %v1818 = vmul.f32 %v1812, 0.70710677
        %v1819 = verf.f32.pop %v1818
        %v1820 = vadd.f32 %v1819, 1.0
        %v1821 = vmul.f32 %v1817, %v1820
        %v1822 = vpack.c.bf16 %v1821, %v1821
        %v1823 = vld [vmem:[%s908] sm:$0xf]
        %v1824 = vld [vmem:[%s908 + $0x4] sm:$0xf]
        %v1825 = vld [vmem:[%s908 + $0x8] sm:$0xf]
        %v1826 = vld [vmem:[%s908 + $0xc] sm:$0xf]
        %v1827 = vld [vmem:[%s908 + $0x10] sm:$0xf]
        %v1828 = vld [vmem:[%s908 + $0x14] sm:$0xf]
        %v1829 = vld [vmem:[%s908 + $0x18] sm:$0xf]
        %v1830 = vld [vmem:[%s908 + $0x1c] sm:$0xf]
        %v1831 = vld [vmem:[%s908 + $0x20] sm:$0xf]
        %v1832 = vld [vmem:[%s908 + $0x24] sm:$0xf]
        %v1833 = vld [vmem:[%s908 + $0x28] sm:$0xf]
        %v1834 = vld [vmem:[%s908 + $0x2c] sm:$0xf]
        %v1835 = vld [vmem:[%s908 + $0x30] sm:$0xf]
        %v1836 = vld [vmem:[%s908 + $0x34] sm:$0xf]
        %v1837 = vld [vmem:[%s908 + $0x38] sm:$0xf]
        %v1838 = vld [vmem:[%s908 + $0x3c] sm:$0xf]
        %v1839 = vld [vmem:[%s911] sm:$0x1]
        %v1841 = vlaneseq
        %v1842 = vshrl.u32 %v1841, 7
        %v1843 = vsub.s32 0, %v1842
        %v1844 = vrot.slane %v1839, %v1843
        %v1862 = vunpack.c.l.b16 %v1823
        %v1863 = vunpack.c.l.b16 %v1824
        %v1864 = vunpack.c.l.b16 %v1825
        %v1865 = vunpack.c.l.b16 %v1826
        %v1866 = vunpack.c.l.b16 %v1827
        %v1867 = vunpack.c.l.b16 %v1828
        %v1868 = vunpack.c.l.b16 %v1829
        %v1869 = vunpack.c.l.b16 %v1830
        %v1870 = vunpack.c.l.b16 %v1831
        %v1871 = vunpack.c.l.b16 %v1832
        %v1872 = vunpack.c.l.b16 %v1833
        %v1873 = vunpack.c.l.b16 %v1834
        %v1874 = vunpack.c.l.b16 %v1835
        %v1875 = vunpack.c.l.b16 %v1836
        %v1876 = vunpack.c.l.b16 %v1837
        %v1877 = vunpack.c.l.b16 %v1838
        %v1878 = vpack.c.b16 %v1863, %v1862
        %v1879 = vpack.c.b16 %v1865, %v1864
        %v1880 = vpack.c.b16 %v1867, %v1866
        %v1881 = vpack.c.b16 %v1869, %v1868
        %v1882 = vpack.c.b16 %v1871, %v1870
        %v1883 = vpack.c.b16 %v1873, %v1872
        %v1884 = vpack.c.b16 %v1875, %v1874
        %v1885 = vpack.c.b16 %v1877, %v1876
        %1894 = vmatprep.subr.bf16.mxu0 0
        %1895 = vmatpush1.bf16.msra.mxu0 %v1878
        %1896 = vmatprep.subr.bf16.mxu0 0
        %1897 = vmatpush1.bf16.msra.mxu0 %v1879
        %1898 = vmatprep.subr.bf16.mxu0 0
        %1899 = vmatpush1.bf16.msra.mxu0 %v1880
        %1900 = vmatprep.subr.bf16.mxu0 0
        %1901 = vmatpush1.bf16.msra.mxu0 %v1881
        %1902 = vmatprep.subr.bf16.mxu0 0
        %1903 = vmatpush1.bf16.msra.mxu0 %v1882
        %1904 = vmatprep.subr.bf16.mxu0 0
        %1905 = vmatpush1.bf16.msra.mxu0 %v1883
        %1906 = vmatprep.subr.bf16.mxu0 0
        %1907 = vmatpush1.bf16.msra.mxu0 %v1884
        %1908 = vmatprep.subr.bf16.mxu0 0
        %1909 = vmatpush1.bf16.msra.mxu0 %v1885
        %1910 = vmatprep.subr.bf16.mxu0 0
        %1911 = vmatpush1.bf16.msra.mxu0 0
        %1912 = vmatprep.subr.bf16.mxu0 0
        %1913 = vmatpush1.bf16.msra.mxu0 0
        %1914 = vmatprep.subr.bf16.mxu0 0
        %1915 = vmatpush1.bf16.msra.mxu0 0
        %1916 = vmatprep.subr.bf16.mxu0 0
        %1917 = vmatpush1.bf16.msra.mxu0 0
        %1918 = vmatprep.subr.bf16.mxu0 0
        %1919 = vmatpush1.bf16.msra.mxu0 0
        %1920 = vmatprep.subr.bf16.mxu0 0
        %1921 = vmatpush1.bf16.msra.mxu0 0
        %1922 = vmatprep.subr.bf16.mxu0 0
        %1923 = vmatpush1.bf16.msra.mxu0 0
        %1924 = vmatprep.subr.bf16.mxu0 0
        %1925 = vmatpush1.bf16.msra.mxu0 0
        %1926 = vmatprep.mubr.bf16.mxu0 0
        %1927 = vmatmul.mubr.bf16.gmra.mrb[0].mxu0 %v1822
        %v1928 = vpop.f32.mrb[0].mxu0
        %v1929 = vadd.f32 %v1844, %v1928
        %v1930 = vpop.f32.mrb[0].mxu0
        %v1931 = vpop.f32.mrb[0].mxu0
        %v1932 = vpop.f32.mrb[0].mxu0
        %1933 = vdwg.mxu0
        %v1934 = vadd.f32 %v1720, %v1929
        %1935 = vst.msk [vmem:[#allocation2] sm:$0x3f] %vm1082, %v1934
        %p1936 = scmp.eq.s32.totalorder %s42, 1
        // Predicated region
        $region117: #{vint_forward.1} parent=111 // pred_check
          %p1937 = pneg %p1936
        $region118: #{vint_forward.1} parent=111 // pred_check_branch
          %1939 = sbr.rel (%p1937) target = $region120
        $region119: #{vint_forward.1} parent=111 // pred_region
          %v1940 = vld [vmem:[%s17] sm:$0x1]
          %v1941 = vld [vmem:[%s18] sm:$0x1]
          %vm1942 = vcmask 253952
          %v1943 = vsel %vm1942, %v1934, 0.0
          %1944 = vadd.xlane.f32.xlu0 %v1943
          %v1945 = vpop.xlane.xlu0 %1944
          %v1946 = vmul.f32 %v1945, %v1086
          %v1947 = vsub.f32 %v1934, %v1946
          %v1948 = vmul.f32 %v1947, %v1947
          %v1949 = vsel %vm1942, %v1948, 0.0
          %1950 = vadd.xlane.f32.xlu0 %v1949
          %v1951 = vpop.xlane.xlu0 %1950
          %v1952 = vmul.f32 %v1951, %v1086
          %v1953 = vadd.f32 %v1952, 1e-06
          %v1954 = vrsqrt.pop %v1953
          %v1955 = vmul.f32 %v1947, %v1954
          %v1956 = vmul.f32 %v1955, %v1940
          %v1957 = vadd.f32 %v1956, %v1941
          %v1958 = vpack.c.bf16 %v1957, %v1957
          %vm1959 = vcmask 254977
          %v1960 = vsel %vm1959, %v1934, 0.0
          %1961 = vadd.xlane.f32.xlu0 %v1960
          %v1962 = vpop.xlane.xlu0 %1961
          %v1963 = vmul.f32 %v1962, %v1086
          %v1964 = vsub.f32 %v1934, %v1963
          %v1965 = vmul.f32 %v1964, %v1964
          %v1966 = vsel %vm1959, %v1965, 0.0
          %1967 = vadd.xlane.f32.xlu0 %v1966
          %v1968 = vpop.xlane.xlu0 %1967
          %v1969 = vmul.f32 %v1968, %v1086
          %v1970 = vadd.f32 %v1969, 1e-06
          %v1971 = vrsqrt.pop %v1970
          %v1972 = vmul.f32 %v1964, %v1971
          %v1974 = vlaneseq
          %v1975 = vshrl.u32 %v1974, 7
          %v1976 = vsub.s32 0, %v1975
          %v1977 = vrot.slane %v1940, %v1976
          %v1979 = vmul.f32 %v1972, %v1977
          %v1981 = vlaneseq
          %v1982 = vshrl.u32 %v1981, 7
          %v1983 = vsub.s32 0, %v1982
          %v1984 = vrot.slane %v1941, %v1983
          %v1986 = vadd.f32 %v1979, %v1984
          %v1987 = vpack.c.bf16 %v1986, %v1986
          %v1988 = vld [vmem:[%s19] sm:$0xf]
          %v1989 = vld [vmem:[%s19 + $0x4] sm:$0xf]
          %v1990 = vld [vmem:[%s19 + $0x8] sm:$0xf]
          %v1991 = vld [vmem:[%s19 + $0xc] sm:$0xf]
          %v1992 = vld [vmem:[%s20] sm:$0x1]
          %v1997 = vunpack.c.l.b16 %v1988
          %v1998 = vunpack.c.l.b16 %v1989
          %v1999 = vunpack.c.l.b16 %v1990
          %v2000 = vunpack.c.l.b16 %v1991
          %v2001 = vpack.c.b16 %v1998, %v1997
          %v2002 = vpack.c.b16 %v2000, %v1999
          %v2006 = vsel %vm1135, %v1958, 0
          %2008 = vmatprep.subr.bf16.mxu0 0
          %2009 = vmatpush1.bf16.msra.mxu0 %v2001
          %2010 = vmatprep.subr.bf16.mxu0 0
          %2011 = vmatpush1.bf16.msra.mxu0 %v2002
          %2012 = vmatprep.subr.bf16.mxu0 0
          %2013 = vmatpush1.bf16.msra.mxu0 0
          %2014 = vmatprep.subr.bf16.mxu0 0
          %2015 = vmatpush1.bf16.msra.mxu0 0
          %2016 = vmatprep.subr.bf16.mxu0 0
          %2017 = vmatpush1.bf16.msra.mxu0 0
          %2018 = vmatprep.subr.bf16.mxu0 0
          %2019 = vmatpush1.bf16.msra.mxu0 0
          %2020 = vmatprep.subr.bf16.mxu0 0
          %2021 = vmatpush1.bf16.msra.mxu0 0
          %2022 = vmatprep.subr.bf16.mxu0 0
          %2023 = vmatpush1.bf16.msra.mxu0 0
          %2024 = vmatprep.subr.bf16.mxu0 0
          %2025 = vmatpush1.bf16.msra.mxu0 0
          %2026 = vmatprep.subr.bf16.mxu0 0
          %2027 = vmatpush1.bf16.msra.mxu0 0
          %2028 = vmatprep.subr.bf16.mxu0 0
          %2029 = vmatpush1.bf16.msra.mxu0 0
          %2030 = vmatprep.subr.bf16.mxu0 0
          %2031 = vmatpush1.bf16.msra.mxu0 0
          %2032 = vmatprep.subr.bf16.mxu0 0
          %2033 = vmatpush1.bf16.msra.mxu0 0
          %2034 = vmatprep.subr.bf16.mxu0 0
          %2035 = vmatpush1.bf16.msra.mxu0 0
          %2036 = vmatprep.subr.bf16.mxu0 0
          %2037 = vmatpush1.bf16.msra.mxu0 0
          %2038 = vmatprep.subr.bf16.mxu0 0
          %2039 = vmatpush1.bf16.msra.mxu0 0
          %2040 = vmatprep.mubr.bf16.mxu0 0
          %2041 = vmatmul.mubr.bf16.gmra.mrb[0].mxu0 %v2006
          %v2042 = vpop.f32.mrb[0].mxu0
          %v2043 = vadd.f32 %v1992, %v2042
          %v2044 = vpop.f32.mrb[0].mxu0
          %v2045 = vpop.f32.mrb[0].mxu0
          %v2046 = vpop.f32.mrb[0].mxu0
          %2047 = vdwg.mxu0
          %v2048 = vld [vmem:[%s21] sm:$0xf]
          %v2049 = vld [vmem:[%s21 + $0x4] sm:$0xf]
          %v2050 = vld [vmem:[%s21 + $0x8] sm:$0xf]
          %v2051 = vld [vmem:[%s21 + $0xc] sm:$0xf]
          %v2052 = vld [vmem:[%s22] sm:$0x1]
          %v2054 = vshrl.u32 %v1987, 16
          %v2060 = vunpack.c.l.b16 %v2048
          %v2061 = vunpack.c.l.b16 %v2049
          %v2062 = vunpack.c.l.b16 %v2050
          %v2063 = vunpack.c.l.b16 %v2051
          %v2064 = vpack.c.b16 %v2061, %v2060
          %v2065 = vpack.c.b16 %v2063, %v2062
          %v2069 = vsel %vm1135, %v2054, 0
          %2071 = vmatprep.subr.bf16.mxu0 0
          %2072 = vmatpush1.bf16.msra.mxu0 %v2064
          %2073 = vmatprep.subr.bf16.mxu0 0
          %2074 = vmatpush1.bf16.msra.mxu0 %v2065
          %2075 = vmatprep.subr.bf16.mxu0 0
          %2076 = vmatpush1.bf16.msra.mxu0 0
          %2077 = vmatprep.subr.bf16.mxu0 0
          %2078 = vmatpush1.bf16.msra.mxu0 0
          %2079 = vmatprep.subr.bf16.mxu0 0
          %2080 = vmatpush1.bf16.msra.mxu0 0
          %2081 = vmatprep.subr.bf16.mxu0 0
          %2082 = vmatpush1.bf16.msra.mxu0 0
          %2083 = vmatprep.subr.bf16.mxu0 0
          %2084 = vmatpush1.bf16.msra.mxu0 0
          %2085 = vmatprep.subr.bf16.mxu0 0
          %2086 = vmatpush1.bf16.msra.mxu0 0
          %2087 = vmatprep.subr.bf16.mxu0 0
          %2088 = vmatpush1.bf16.msra.mxu0 0
          %2089 = vmatprep.subr.bf16.mxu0 0
          %2090 = vmatpush1.bf16.msra.mxu0 0
          %2091 = vmatprep.subr.bf16.mxu0 0
          %2092 = vmatpush1.bf16.msra.mxu0 0
          %2093 = vmatprep.subr.bf16.mxu0 0
          %2094 = vmatpush1.bf16.msra.mxu0 0
          %2095 = vmatprep.subr.bf16.mxu0 0
          %2096 = vmatpush1.bf16.msra.mxu0 0
          %2097 = vmatprep.subr.bf16.mxu0 0
          %2098 = vmatpush1.bf16.msra.mxu0 0
          %2099 = vmatprep.subr.bf16.mxu0 0
          %2100 = vmatpush1.bf16.msra.mxu0 0
          %2101 = vmatprep.subr.bf16.mxu0 0
          %2102 = vmatpush1.bf16.msra.mxu0 0
          %2103 = vmatprep.mubr.bf16.mxu0 0
          %2104 = vmatmul.mubr.bf16.gmra.mrb[0].mxu0 %v2069
          %v2105 = vpop.f32.mrb[0].mxu0
          %v2106 = vadd.f32 %v2052, %v2105
          %v2107 = vpop.f32.mrb[0].mxu0
          %v2108 = vpop.f32.mrb[0].mxu0
          %v2109 = vpop.f32.mrb[0].mxu0
          %2110 = vdwg.mxu0
          %v2111 = vadd.f32 %v2043, %v2106
          %v2112 = vmul.f32 %v2111, 0.5
          %vm2113 = vcmask 73728
          %2114 = vst.msk [vmem:[%s862] sm:$0x1] %vm2113, %v2112
        $region120: #{vint_forward.1} parent=111 // pred_fallthru
          _
        %s2115 = sand.u32 %s605, 1
        %s2116 = scalar_lea.sflag [#allocation5], %s2115
        %s2117 = sand.u32 %s605, 1
        %s2118 = scalar_lea.vmem [#allocation4], %s2117
        // Predicated region
        $region121: #{vint_forward.1} parent=111 // pred_check
          %p2119 = pneg %p615
        $region122: #{vint_forward.1} parent=111 // pred_check_branch
          %2121 = sbr.rel (%p2119) target = $region124
        $region123: #{vint_forward.1} parent=111 // pred_region
          %s2123 = ssub.s32 16, 16
          %2124 = vsyncadd %s2116, %s2123
          %s2125 = smul.addr %s41, 16
          %s2126 = scalar_lea.hbm %s23, %s2125
          %s2128 = sshll.u32 %s2118, 4
          %s2129 = int_to_ptr.vmem [resolvable:$true] %s2128
          %2131 = dma.vmem_to_hbm [thread:$0]  %s2129, 16, %s2126, %s2116
        $region124: #{vint_forward.1} parent=111 // pred_fallthru
          _
      $region112: #{vint_forward.1} parent=5 // pred_fallthru
        _
      %p2132 = scmp.le.s32.totalorder 2, %s32
      // Predicated region
      $region125: #{vint_forward.1} parent=5 // pred_check
        %p2133 = pneg %p2132
      $region126: #{vint_forward.1} parent=5 // pred_check_branch
        %2135 = sbr.rel (%p2133) target = $region128
      $region127: #{vint_forward.1} parent=5 // pred_region
        %s2136 = ssub.s32 %s32, 2
        // Predicated region
        $region129: #{vint_forward.1} parent=127 // pred_check
          %p2137 = pneg %p621
        $region130: #{vint_forward.1} parent=127 // pred_check_branch
          %2139 = sbr.rel (%p2137) target = $region132
        $region131: #{vint_forward.1} parent=127 // pred_region
          %s2140 = sand.u32 %s606, 1
          %s2141 = scalar_lea.sflag [#allocation5], %s2140
          %s2142 = sand.u32 %s606, 1
          %s2143 = scalar_lea.vmem [#allocation4], %s2142
          %2144 = dma.done %s2141, 16
        $region132: #{vint_forward.1} parent=127 // pred_fallthru
          _
      $region128: #{vint_forward.1} parent=5 // pred_fallthru
        _
    $region6: #{vint_forward.1} parent=1 // loop_footer
      %s36 = sadd.s32 1, %s32
    $region7: #{vint_forward.1} parent=1 // loop_footer_branch
      %31 = sbr.rel target = $region3
    $region8: #{vint_forward.1} parent=1 // loop_exit
      _
    %2145 = vsyncpa [#allocation5], 1
    %s2146 = scalar_lea.sflag [#allocation5], 1
    %2147 = vsyncpa %s2146, 1

</llo_original>
